<compile_context>
chip_gen: v7x
topology: tpu7x:2x2x1
jax: 0.10.0
libtpu: 0.0.40
codegen_flags: <defaults>
</compile_context>

<pallas_src>
import functools
import math

import jax
import jax.numpy as jnp
from jax.experimental import pallas as pl
from jax.experimental.pallas import tpu as pltpu

LN_EPS = 1e-5


def _round_up(n, m):
    return ((n + m - 1) // m) * m


def _vmem_capacity_bytes():
    try:
        return int(pltpu.get_tpu_info().vmem_capacity_bytes)
    except Exception:
        # Unknown generation / older jax: assume the smallest (v7x, 64 MiB/TC).
        return 64 * 1024 * 1024


def _attn_quant_kernel(x_ref, ln_ref, e_ref, o_ref,
                       q_sc, m_sc, l_sc, acc_sc, *,
                       seq_len, n_real, is_causal, tile_r, chunk_n):
    # Grid = (row tiles [parallel], codebook chunks [arbitrary / reduction]).
    # x_ref : (tile_r, D)   activation rows (flattened B*T), native dtype
    # ln_ref: (2, D)        row 0 = LayerNorm weight, row 1 = bias (f32)
    # e_ref : (chunk_n, D)  bf16 codebook chunk (shared key & value)
    # o_ref : (tile_r, D)   output in the activation dtype
    k = pl.program_id(1)
    R, D = x_ref.shape

    # --- k == 0: LayerNorm this row tile once, init online-softmax state ---
    @pl.when(k == 0)
    def _():
        x = x_ref[...].astype(jnp.float32)
        w = ln_ref[0:1, :]                              # (1, D)
        b = ln_ref[1:2, :]
        inv_d = jnp.float32(1.0 / D)
        mean = jnp.sum(x, axis=-1, keepdims=True) * inv_d
        xc = x - mean
        var = jnp.sum(xc * xc, axis=-1, keepdims=True) * inv_d
        xn = xc * jax.lax.rsqrt(var + LN_EPS) * w + b
        # fold the 1/sqrt(D) attention scale into the (R, D) activations
        q_sc[...] = (xn * jnp.float32(1.0 / math.sqrt(D))).astype(q_sc.dtype)
        m_sc[...] = jnp.full_like(m_sc, -jnp.inf)
        l_sc[...] = jnp.zeros_like(l_sc)
        acc_sc[...] = jnp.zeros_like(acc_sc)

    # --- scores for this codebook chunk: q @ e^T without transposing e ---
    e = e_ref[...]                                       # (chunk_n, D) bf16
    q = q_sc[...]                                        # (R, D) bf16
    scores = jax.lax.dot_general(
        q, e, dimension_numbers=(((1,), (1,)), ((), ())),
        preferred_element_type=jnp.float32)              # (R, chunk_n) f32 accum

    # --- mask: codebook padding + causal (key index j visible to query t>=j) ---
    col = k * chunk_n + jax.lax.broadcasted_iota(jnp.int32, (R, chunk_n), 1)
    valid = col < n_real
    if is_causal:
        row = pl.program_id(0) * tile_r + jax.lax.broadcasted_iota(
            jnp.int32, (R, 1), 0)
        t = jax.lax.rem(row, seq_len)                    # sequence position per row
        valid = jnp.logical_and(valid, col <= t)
    # Safe: column 0 (in chunk 0) is always visible for every real row.
    scores = jnp.where(valid, scores, jnp.float32(-1e30))

    # --- online softmax over codebook chunks (all f32) ---
    m_prev = m_sc[...]
    m_new = jnp.maximum(m_prev, jnp.max(scores, axis=-1, keepdims=True))
    alpha = jnp.exp(m_prev - m_new)
    p = jnp.exp(scores - m_new)
    l_sc[...] = alpha * l_sc[...] + jnp.sum(p, axis=-1, keepdims=True)
    acc_sc[...] = alpha * acc_sc[...] + jnp.dot(
        p.astype(jnp.bfloat16), e, preferred_element_type=jnp.float32)
    m_sc[...] = m_new

    # --- last chunk: normalize and store in the activation dtype ---
    @pl.when(k == pl.num_programs(1) - 1)
    def _():
        inv_l = pl.reciprocal(l_sc[...], approx=True)    # EUP slot, ~1e-3 rel err
        o_ref[...] = (acc_sc[...] * inv_l).astype(o_ref.dtype)


def attention_quantize(x, ln_w, ln_b, embd, *, is_causal=True, max_row_tile=1024):
    """x: (B, T, D); ln_w, ln_b: (D,); embd: (N, D).  Returns (out, None)."""
    B, T, D = x.shape
    N = embd.shape[0]
    rows = B * T

    in_bytes = jnp.dtype(x.dtype).itemsize
    out_bytes = in_bytes                       # output streamed in x.dtype
    sub = max(8, 32 // in_bytes)               # sublane granule for the row axis

    # ---- explicit VMEM budget (v5e/v6e: 128 MiB, v7x: 64 MiB per TC) ----
    vmem_cap = _vmem_capacity_bytes()
    budget = int(0.45 * vmem_cap)              # headroom for compiler scratch

    # Codebook chunking: (double-buffered) bf16 chunk capped at ~budget/3.
    n_pad128 = _round_up(N, 128)
    max_chunk = max(128, ((budget // 3) // (2 * D * 2)) // 128 * 128)
    chunk_n = min(n_pad128, max_chunk)
    n_pad = _round_up(N, chunk_n)
    n_k = n_pad // chunk_n

    # Row tile from what is left: pipelined x/out tiles + f32 scores/probs +
    # f32 LN/acc temporaries + bf16 q scratch.
    resident = 2 * chunk_n * D * 2 + 2 * 2 * D * 4
    per_row = (2 * D * in_bytes + 2 * D * out_bytes
               + 8 * chunk_n
               + 4 * D * 4 + D * 2 + 8)
    avail = max(budget - resident, sub * per_row)
    tile_r = min(avail // per_row, max_row_tile, _round_up(rows, sub))
    if rows > sub:
        # Keep >= 2 row tiles so the "parallel" axis splits across v7x's 2 TCs.
        tile_r = min(tile_r, _round_up(pl.cdiv(rows, 2), sub))
    tile_r = max(sub, tile_r - (tile_r % sub))
    n_row_tiles = pl.cdiv(rows, tile_r)

    vmem_limit = min(int(0.85 * vmem_cap), 100 * 1024 * 1024)

    # ---- operands: no activation pad / cast passes (Pallas handles the ragged
    #      last row tile; block last-dim == full D avoids lane-pad store blowup)
    x2 = x.reshape(rows, D)
    ln_p = jnp.stack([ln_w, ln_b], axis=0).astype(jnp.float32)   # (2, D) fused
    # TODO(synk): hoist this one-time pad + bf16 cast out of the traced call
    # path when the codebook is static across calls (extra HBM pass over embd).
    e2 = jnp.pad(embd, ((0, n_pad - N), (0, 0))).astype(jnp.bfloat16)

    kernel = functools.partial(
        _attn_quant_kernel, seq_len=T, n_real=N, is_causal=is_causal,
        tile_r=tile_r, chunk_n=chunk_n)

    def run(use_buffered):
        def spec(shape, index_map, single_buffer):
            if use_buffered and single_buffer:
                return pl.BlockSpec(shape, index_map,
                                    pipeline_mode=pl.Buffered(1))
            return pl.BlockSpec(shape, index_map)

        return pl.pallas_call(
            kernel,
            out_shape=jax.ShapeDtypeStruct((rows, D), x.dtype),
            grid_spec=pltpu.PrefetchScalarGridSpec(
                num_scalar_prefetch=0,
                grid=(n_row_tiles, n_k),
                in_specs=[
                    spec((tile_r, D), lambda i, k: (i, 0), False),      # x rows
                    spec((2, D), lambda i, k: (0, 0), True),            # LN w|b
                    spec((chunk_n, D), lambda i, k: (k, 0), n_k == 1),  # codebook
                ],
                out_specs=spec((tile_r, D), lambda i, k: (i, 0), False),
                scratch_shapes=[
                    pltpu.VMEM((tile_r, D), jnp.bfloat16),   # q = scaled LN(x)
                    pltpu.VMEM((tile_r, 1), jnp.float32),    # running max
                    pltpu.VMEM((tile_r, 1), jnp.float32),    # running denom
                    pltpu.VMEM((tile_r, D), jnp.float32),    # running P@V acc
                ],
            ),
            compiler_params=pltpu.CompilerParams(
                dimension_semantics=("parallel", "arbitrary"),
                vmem_limit_bytes=vmem_limit,
            ),
        )(x2, ln_p, e2)

    try:
        out = run(use_buffered=hasattr(pl, "Buffered"))
    except Exception:
        # pipeline_mode / Buffered(1) unsupported on this jax build -> default
        # double buffering (correctness identical, slightly more VMEM).
        out = run(use_buffered=False)

    return out.reshape(B, T, D), None


def _reference(x, ln_w, ln_b, embd, is_causal=True):
    # Pure-JAX f32 reference for sanity checking.
    mean = jnp.mean(x, axis=-1, keepdims=True)
    var = jnp.mean((x - mean) ** 2, axis=-1, keepdims=True)
    xn = (x - mean) / jnp.sqrt(var + LN_EPS) * ln_w + ln_b
    D = x.shape[-1]
    scores = jnp.einsum("btd,nd->btn", xn, embd) / math.sqrt(D)
    if is_causal:
        T, N = scores.shape[-2], scores.shape[-1]
        row = jnp.arange(T)[:, None]
        col = jnp.arange(N)[None, :]
        scores = jnp.where(col <= row, scores, -jnp.inf)
    probs = jax.nn.softmax(scores, axis=-1)
    return jnp.einsum("btn,nd->btd", probs, embd)


if __name__ == "__main__":
    # Module hyperparams (synthetic, deterministic init — no checkpoint load).
    n_embed = 16      # codebook size
    embd_dim = 32     # embd_dim
    B, T = 2, 8       # batch, sequence length

    key = jax.random.PRNGKey(0)
    k_x, k_e = jax.random.split(key)

    x = jax.random.normal(k_x, (B, T, embd_dim), dtype=jnp.float32)
    embd = jax.random.normal(k_e, (n_embed, embd_dim), dtype=jnp.float32)
    ln_w = jnp.ones((embd_dim,), dtype=jnp.float32)
    ln_b = jnp.zeros((embd_dim,), dtype=jnp.float32)

    quantize, aux = attention_quantize(x, ln_w, ln_b, embd, is_causal=True)
    quantize = jax.block_until_ready(quantize)

    ref = _reference(x, ln_w, ln_b, embd, is_causal=True)
    assert quantize.shape == (B, T, embd_dim)
    assert aux is None
    # Tolerance loosened for bf16 MXU matmuls + approx reciprocal.
    err = float(jnp.max(jnp.abs(quantize - ref)))
    assert jnp.allclose(quantize, ref, atol=5e-2, rtol=5e-2), err

    print("KERNEL_OK")
</pallas_src>

<mosaic_0001>
module attributes {stable_mosaic.version = 11 : i64} {
  func.func @_attn_quant_kernel(%arg0: i32, %arg1: i32, %arg2: memref<8x32xf32, #tpu.memory_space<vmem>>, %arg3: memref<2x32xf32, #tpu.memory_space<vmem>>, %arg4: memref<128x32xbf16, #tpu.memory_space<vmem>>, %arg5: memref<8x32xf32, #tpu.memory_space<vmem>>, %arg6: memref<8x32xbf16, #tpu.memory_space<vmem>>, %arg7: memref<8x1xf32, #tpu.memory_space<vmem>>, %arg8: memref<8x1xf32, #tpu.memory_space<vmem>>, %arg9: memref<8x32xf32, #tpu.memory_space<vmem>>) attributes {dimension_semantics = [#tpu.dimension_semantics<parallel>, #tpu.dimension_semantics<arbitrary>], iteration_bounds = array<i64: 2, 1>, scalar_prefetch = 0 : i64, scratch_operands = 4 : i64, tpu.core_type = #tpu.core_type<tc>, window_params = [{transform_indices = @transform_0, window_bounds = array<i64: 8, 32>}, {pipeline_mode = #tpu.pipeline_mode<synchronous>, transform_indices = @transform_1, window_bounds = array<i64: 2, 32>}, {pipeline_mode = #tpu.pipeline_mode<synchronous>, transform_indices = @transform_2, window_bounds = array<i64: 128, 32>}, {transform_indices = @transform_3, window_bounds = array<i64: 8, 32>}]} {
    %c0_i32 = arith.constant 0 : i32
    %0 = arith.cmpi eq, %arg1, %c0_i32 : i32
    %1 = arith.extui %0 : i1 to i32
    %c0_i32_0 = arith.constant 0 : i32
    %2 = arith.cmpi ne, %1, %c0_i32_0 : i32
    scf.if %2 {
      %c0_23 = arith.constant 0 : index
      %c0_24 = arith.constant 0 : index
      %49 = vector.load %arg2[%c0_23, %c0_24] : memref<8x32xf32, #tpu.memory_space<vmem>>, vector<8x32xf32>
      %c0_25 = arith.constant 0 : index
      %c0_26 = arith.constant 0 : index
      %50 = vector.load %arg3[%c0_25, %c0_26] : memref<2x32xf32, #tpu.memory_space<vmem>>, vector<1x32xf32>
      %c1 = arith.constant 1 : index
      %c0_27 = arith.constant 0 : index
      %51 = vector.load %arg3[%c1, %c0_27] : memref<2x32xf32, #tpu.memory_space<vmem>>, vector<1x32xf32>
      %cst_28 = arith.constant dense<0.000000e+00> : vector<8xf32>
      %52 = vector.multi_reduction <add>, %49, %cst_28 [1] : vector<8x32xf32> to vector<8xf32>
      %53 = vector.shape_cast %52 : vector<8xf32> to vector<8x1xf32>
      %cst_29 = arith.constant 3.125000e-02 : f32
      %54 = vector.broadcast %cst_29 : f32 to vector<8x1xf32>
      %55 = arith.mulf %53, %54 : vector<8x1xf32>
      %56 = vector.broadcast %55 : vector<8x1xf32> to vector<8x32xf32>
      %57 = arith.subf %49, %56 : vector<8x32xf32>
      %58 = arith.mulf %57, %57 : vector<8x32xf32>
      %cst_30 = arith.constant dense<0.000000e+00> : vector<8xf32>
      %59 = vector.multi_reduction <add>, %58, %cst_30 [1] : vector<8x32xf32> to vector<8xf32>
      %60 = vector.shape_cast %59 : vector<8xf32> to vector<8x1xf32>
      %cst_31 = arith.constant 3.125000e-02 : f32
      %61 = vector.broadcast %cst_31 : f32 to vector<8x1xf32>
      %62 = arith.mulf %60, %61 : vector<8x1xf32>
      %cst_32 = arith.constant 9.99999974E-6 : f32
      %63 = vector.broadcast %cst_32 : f32 to vector<8x1xf32>
      %64 = arith.addf %62, %63 : vector<8x1xf32>
      %65 = math.rsqrt %64 : vector<8x1xf32>
      %66 = vector.broadcast %65 : vector<8x1xf32> to vector<8x32xf32>
      %67 = arith.mulf %57, %66 : vector<8x32xf32>
      %68 = vector.broadcast %50 : vector<1x32xf32> to vector<8x32xf32>
      %69 = arith.mulf %67, %68 : vector<8x32xf32>
      %70 = vector.broadcast %51 : vector<1x32xf32> to vector<8x32xf32>
      %71 = arith.addf %69, %70 : vector<8x32xf32>
      %cst_33 = arith.constant 0.176776692 : f32
      %72 = vector.broadcast %cst_33 : f32 to vector<8x32xf32>
      %73 = arith.mulf %71, %72 : vector<8x32xf32>
      %74 = arith.truncf %73 : vector<8x32xf32> to vector<8x32xbf16>
      %c0_34 = arith.constant 0 : index
      %c0_35 = arith.constant 0 : index
      %75 = vector.load %arg6[%c0_34, %c0_35] : memref<8x32xbf16, #tpu.memory_space<vmem>>, vector<8x32xbf16>
      tpu.vector_store %arg6[%c0_34, %c0_35], %74 {strides = array<i32>} : memref<8x32xbf16, #tpu.memory_space<vmem>>, vector<8x32xbf16>,
      %cst_36 = arith.constant 0xFF800000 : f32
      %76 = vector.broadcast %cst_36 : f32 to vector<8x1xf32>
      %c0_37 = arith.constant 0 : index
      %c0_38 = arith.constant 0 : index
      %77 = vector.load %arg7[%c0_37, %c0_38] : memref<8x1xf32, #tpu.memory_space<vmem>>, vector<8x1xf32>
      tpu.vector_store %arg7[%c0_37, %c0_38], %76 {strides = array<i32>} : memref<8x1xf32, #tpu.memory_space<vmem>>, vector<8x1xf32>,
      %cst_39 = arith.constant 0.000000e+00 : f32
      %78 = vector.broadcast %cst_39 : f32 to vector<8x1xf32>
      %c0_40 = arith.constant 0 : index
      %c0_41 = arith.constant 0 : index
      %79 = vector.load %arg8[%c0_40, %c0_41] : memref<8x1xf32, #tpu.memory_space<vmem>>, vector<8x1xf32>
      tpu.vector_store %arg8[%c0_40, %c0_41], %78 {strides = array<i32>} : memref<8x1xf32, #tpu.memory_space<vmem>>, vector<8x1xf32>,
      %cst_42 = arith.constant 0.000000e+00 : f32
      %80 = vector.broadcast %cst_42 : f32 to vector<8x32xf32>
      %c0_43 = arith.constant 0 : index
      %c0_44 = arith.constant 0 : index
      %81 = vector.load %arg9[%c0_43, %c0_44] : memref<8x32xf32, #tpu.memory_space<vmem>>, vector<8x32xf32>
      tpu.vector_store %arg9[%c0_43, %c0_44], %80 {strides = array<i32>} : memref<8x32xf32, #tpu.memory_space<vmem>>, vector<8x32xf32>,
    } else {
    }
    %c0 = arith.constant 0 : index
    %c0_1 = arith.constant 0 : index
    %3 = vector.load %arg4[%c0, %c0_1] : memref<128x32xbf16, #tpu.memory_space<vmem>>, vector<128x32xbf16>
    %c0_2 = arith.constant 0 : index
    %c0_3 = arith.constant 0 : index
    %4 = vector.load %arg6[%c0_2, %c0_3] : memref<8x32xbf16, #tpu.memory_space<vmem>>, vector<8x32xbf16>
    %cst = arith.constant dense<0.000000e+00> : vector<8x128xf32>
    %5 = tpu.matmul %4, %3, %cst {dimension_numbers = #tpu.dot_dimension_numbers<[1], [1], [0], [0], [0, 0, 1, 0], [], []>} : vector<8x32xbf16>, vector<128x32xbf16>, vector<8x128xf32> -> vector<8x128xf32>
    %c128_i32 = arith.constant 128 : i32
    %6 = arith.muli %arg1, %c128_i32 : i32
    %7 = tpu.iota {dimensions = array<i32: 1>} : vector<8x128xi32>
    %8 = vector.broadcast %6 : i32 to vector<8x128xi32>
    %9 = arith.addi %8, %7 : vector<8x128xi32>
    %c16_i32 = arith.constant 16 : i32
    %10 = vector.broadcast %c16_i32 : i32 to vector<8x128xi32>
    %11 = arith.cmpi slt, %9, %10 : vector<8x128xi32>
    %c8_i32 = arith.constant 8 : i32
    %12 = arith.muli %arg0, %c8_i32 : i32
    %13 = tpu.iota {dimensions = array<i32: 0>} : vector<8x1xi32>
    %14 = vector.broadcast %12 : i32 to vector<8x1xi32>
    %15 = arith.addi %14, %13 : vector<8x1xi32>
    %c8_i32_4 = arith.constant 8 : i32
    %16 = vector.broadcast %c8_i32_4 : i32 to vector<8x1xi32>
    %17 = arith.remsi %15, %16 : vector<8x1xi32>
    %18 = vector.broadcast %17 : vector<8x1xi32> to vector<8x128xi32>
    %19 = arith.cmpi sle, %9, %18 : vector<8x128xi32>
    %20 = arith.andi %11, %19 : vector<8x128xi1>
    %cst_5 = arith.constant -1.000000e+30 : f32
    %21 = vector.broadcast %cst_5 : f32 to vector<8x128xf32>
    %22 = arith.select %20, %5, %21 : vector<8x128xi1>, vector<8x128xf32>
    %c0_6 = arith.constant 0 : index
    %c0_7 = arith.constant 0 : index
    %23 = vector.load %arg7[%c0_6, %c0_7] : memref<8x1xf32, #tpu.memory_space<vmem>>, vector<8x1xf32>
    %cst_8 = arith.constant dense<0xFF800000> : vector<8xf32>
    %24 = vector.multi_reduction <maximumf>, %22, %cst_8 [1] : vector<8x128xf32> to vector<8xf32>
    %25 = vector.shape_cast %24 : vector<8xf32> to vector<8x1xf32>
    %26 = arith.maximumf %23, %25 : vector<8x1xf32>
    %27 = arith.subf %23, %26 : vector<8x1xf32>
    %28 = math.exp %27 : vector<8x1xf32>
    %29 = vector.broadcast %26 : vector<8x1xf32> to vector<8x128xf32>
    %30 = arith.subf %22, %29 : vector<8x128xf32>
    %31 = math.exp %30 : vector<8x128xf32>
    %c0_9 = arith.constant 0 : index
    %c0_10 = arith.constant 0 : index
    %32 = vector.load %arg8[%c0_9, %c0_10] : memref<8x1xf32, #tpu.memory_space<vmem>>, vector<8x1xf32>
    %33 = arith.mulf %28, %32 : vector<8x1xf32>
    %cst_11 = arith.constant dense<0.000000e+00> : vector<8xf32>
    %34 = vector.multi_reduction <add>, %31, %cst_11 [1] : vector<8x128xf32> to vector<8xf32>
    %35 = vector.shape_cast %34 : vector<8xf32> to vector<8x1xf32>
    %36 = arith.addf %33, %35 : vector<8x1xf32>
    %c0_12 = arith.constant 0 : index
    %c0_13 = arith.constant 0 : index
    %37 = vector.load %arg8[%c0_12, %c0_13] : memref<8x1xf32, #tpu.memory_space<vmem>>, vector<8x1xf32>
    tpu.vector_store %arg8[%c0_12, %c0_13], %36 {strides = array<i32>} : memref<8x1xf32, #tpu.memory_space<vmem>>, vector<8x1xf32>,
    %c0_14 = arith.constant 0 : index
    %c0_15 = arith.constant 0 : index
    %38 = vector.load %arg9[%c0_14, %c0_15] : memref<8x32xf32, #tpu.memory_space<vmem>>, vector<8x32xf32>
    %39 = vector.broadcast %28 : vector<8x1xf32> to vector<8x32xf32>
    %40 = arith.mulf %39, %38 : vector<8x32xf32>
    %41 = arith.truncf %31 : vector<8x128xf32> to vector<8x128xbf16>
    %cst_16 = arith.constant dense<0.000000e+00> : vector<8x32xf32>
    %42 = tpu.matmul %41, %3, %cst_16 {dimension_numbers = #tpu.dot_dimension_numbers<[1], [0], [0], [1], [0, 0, 1, 1], [], []>} : vector<8x128xbf16>, vector<128x32xbf16>, vector<8x32xf32> -> vector<8x32xf32>
    %43 = arith.addf %40, %42 : vector<8x32xf32>
    %c0_17 = arith.constant 0 : index
    %c0_18 = arith.constant 0 : index
    %44 = vector.load %arg9[%c0_17, %c0_18] : memref<8x32xf32, #tpu.memory_space<vmem>>, vector<8x32xf32>
    tpu.vector_store %arg9[%c0_17, %c0_18], %43 {strides = array<i32>} : memref<8x32xf32, #tpu.memory_space<vmem>>, vector<8x32xf32>,
    %c0_19 = arith.constant 0 : index
    %c0_20 = arith.constant 0 : index
    %45 = vector.load %arg7[%c0_19, %c0_20] : memref<8x1xf32, #tpu.memory_space<vmem>>, vector<8x1xf32>
    tpu.vector_store %arg7[%c0_19, %c0_20], %26 {strides = array<i32>} : memref<8x1xf32, #tpu.memory_space<vmem>>, vector<8x1xf32>,
    %c0_i32_21 = arith.constant 0 : i32
    %46 = arith.cmpi eq, %arg1, %c0_i32_21 : i32
    %47 = arith.extui %46 : i1 to i32
    %c0_i32_22 = arith.constant 0 : i32
    %48 = arith.cmpi ne, %47, %c0_i32_22 : i32
    scf.if %48 {
      %c0_23 = arith.constant 0 : index
      %c0_24 = arith.constant 0 : index
      %49 = vector.load %arg8[%c0_23, %c0_24] : memref<8x1xf32, #tpu.memory_space<vmem>>, vector<8x1xf32>
      %50 = tpu.reciprocal %49 {approx = true} : vector<8x1xf32> -> vector<8x1xf32>
      %c0_25 = arith.constant 0 : index
      %c0_26 = arith.constant 0 : index
      %51 = vector.load %arg9[%c0_25, %c0_26] : memref<8x32xf32, #tpu.memory_space<vmem>>, vector<8x32xf32>
      %52 = vector.broadcast %50 : vector<8x1xf32> to vector<8x32xf32>
      %53 = arith.mulf %51, %52 : vector<8x32xf32>
      %c0_27 = arith.constant 0 : index
      %c0_28 = arith.constant 0 : index
      %54 = vector.load %arg5[%c0_27, %c0_28] : memref<8x32xf32, #tpu.memory_space<vmem>>, vector<8x32xf32>
      tpu.vector_store %arg5[%c0_27, %c0_28], %53 {strides = array<i32>} : memref<8x32xf32, #tpu.memory_space<vmem>>, vector<8x32xf32>,
    } else {
    }
    return
  }
  func.func @transform_0(%arg0: i32, %arg1: i32) -> (i32, i32) {
    %c0_i32 = arith.constant 0 : i32
    %c0_i32_0 = arith.constant 0 : i32
    return %arg0, %c0_i32 : i32, i32
  }
  func.func @transform_1(%arg0: i32, %arg1: i32) -> (i32, i32) {
    %c0_i32 = arith.constant 0 : i32
    %c0_i32_0 = arith.constant 0 : i32
    %c0_i32_1 = arith.constant 0 : i32
    return %c0_i32, %c0_i32_0 : i32, i32
  }
  func.func @transform_2(%arg0: i32, %arg1: i32) -> (i32, i32) {
    %c0_i32 = arith.constant 0 : i32
    %c0_i32_0 = arith.constant 0 : i32
    return %arg1, %c0_i32 : i32, i32
  }
  func.func @transform_3(%arg0: i32, %arg1: i32) -> (i32, i32) {
    %c0_i32 = arith.constant 0 : i32
    %c0_i32_0 = arith.constant 0 : i32
    return %arg0, %c0_i32 : i32, i32
  }
}

module attributes {stable_mosaic.version = 11 : i64} {
  func.func @_attn_quant_kernel(%arg0: i32, %arg1: i32, %arg2: memref<8x32xf32, #tpu.memory_space<vmem>>, %arg3: memref<2x32xf32, #tpu.memory_space<vmem>>, %arg4: memref<128x32xbf16, #tpu.memory_space<vmem>>, %arg5: memref<8x32xf32, #tpu.memory_space<vmem>>, %arg6: memref<8x32xbf16, #tpu.memory_space<vmem>>, %arg7: memref<8x1xf32, #tpu.memory_space<vmem>>, %arg8: memref<8x1xf32, #tpu.memory_space<vmem>>, %arg9: memref<8x32xf32, #tpu.memory_space<vmem>>) attributes {dimension_semantics = [#tpu.dimension_semantics<parallel>, #tpu.dimension_semantics<arbitrary>], iteration_bounds = array<i64: 2, 1>, scalar_prefetch = 0 : i64, scratch_operands = 4 : i64, tpu.core_type = #tpu.core_type<tc>, window_params = [{transform_indices = @transform_0, window_bounds = array<i64: 8, 32>}, {pipeline_mode = #tpu.pipeline_mode<synchronous>, transform_indices = @transform_1, window_bounds = array<i64: 2, 32>}, {transform_indices = @transform_2, window_bounds = array<i64: 128, 32>}, {transform_indices = @transform_3, window_bounds = array<i64: 8, 32>}]} {
    %c0_i32 = arith.constant 0 : i32
    %0 = arith.cmpi eq, %arg1, %c0_i32 : i32
    %1 = arith.extui %0 : i1 to i32
    %c0_i32_0 = arith.constant 0 : i32
    %2 = arith.cmpi ne, %1, %c0_i32_0 : i32
    scf.if %2 {
      %c0_23 = arith.constant 0 : index
      %c0_24 = arith.constant 0 : index
      %49 = vector.load %arg2[%c0_23, %c0_24] : memref<8x32xf32, #tpu.memory_space<vmem>>, vector<8x32xf32>
      %c0_25 = arith.constant 0 : index
      %c0_26 = arith.constant 0 : index
      %50 = vector.load %arg3[%c0_25, %c0_26] : memref<2x32xf32, #tpu.memory_space<vmem>>, vector<1x32xf32>
      %c1 = arith.constant 1 : index
      %c0_27 = arith.constant 0 : index
      %51 = vector.load %arg3[%c1, %c0_27] : memref<2x32xf32, #tpu.memory_space<vmem>>, vector<1x32xf32>
      %cst_28 = arith.constant dense<0.000000e+00> : vector<8xf32>
      %52 = vector.multi_reduction <add>, %49, %cst_28 [1] : vector<8x32xf32> to vector<8xf32>
      %53 = vector.shape_cast %52 : vector<8xf32> to vector<8x1xf32>
      %cst_29 = arith.constant 3.125000e-02 : f32
      %54 = vector.broadcast %cst_29 : f32 to vector<8x1xf32>
      %55 = arith.mulf %53, %54 : vector<8x1xf32>
      %56 = vector.broadcast %55 : vector<8x1xf32> to vector<8x32xf32>
      %57 = arith.subf %49, %56 : vector<8x32xf32>
      %58 = arith.mulf %57, %57 : vector<8x32xf32>
      %cst_30 = arith.constant dense<0.000000e+00> : vector<8xf32>
      %59 = vector.multi_reduction <add>, %58, %cst_30 [1] : vector<8x32xf32> to vector<8xf32>
      %60 = vector.shape_cast %59 : vector<8xf32> to vector<8x1xf32>
      %cst_31 = arith.constant 3.125000e-02 : f32
      %61 = vector.broadcast %cst_31 : f32 to vector<8x1xf32>
      %62 = arith.mulf %60, %61 : vector<8x1xf32>
      %cst_32 = arith.constant 9.99999974E-6 : f32
      %63 = vector.broadcast %cst_32 : f32 to vector<8x1xf32>
      %64 = arith.addf %62, %63 : vector<8x1xf32>
      %65 = math.rsqrt %64 : vector<8x1xf32>
      %66 = vector.broadcast %65 : vector<8x1xf32> to vector<8x32xf32>
      %67 = arith.mulf %57, %66 : vector<8x32xf32>
      %68 = vector.broadcast %50 : vector<1x32xf32> to vector<8x32xf32>
      %69 = arith.mulf %67, %68 : vector<8x32xf32>
      %70 = vector.broadcast %51 : vector<1x32xf32> to vector<8x32xf32>
      %71 = arith.addf %69, %70 : vector<8x32xf32>
      %cst_33 = arith.constant 0.176776692 : f32
      %72 = vector.broadcast %cst_33 : f32 to vector<8x32xf32>
      %73 = arith.mulf %71, %72 : vector<8x32xf32>
      %74 = arith.truncf %73 : vector<8x32xf32> to vector<8x32xbf16>
      %c0_34 = arith.constant 0 : index
      %c0_35 = arith.constant 0 : index
      %75 = vector.load %arg6[%c0_34, %c0_35] : memref<8x32xbf16, #tpu.memory_space<vmem>>, vector<8x32xbf16>
      tpu.vector_store %arg6[%c0_34, %c0_35], %74 {strides = array<i32>} : memref<8x32xbf16, #tpu.memory_space<vmem>>, vector<8x32xbf16>,
      %cst_36 = arith.constant 0xFF800000 : f32
      %76 = vector.broadcast %cst_36 : f32 to vector<8x1xf32>
      %c0_37 = arith.constant 0 : index
      %c0_38 = arith.constant 0 : index
      %77 = vector.load %arg7[%c0_37, %c0_38] : memref<8x1xf32, #tpu.memory_space<vmem>>, vector<8x1xf32>
      tpu.vector_store %arg7[%c0_37, %c0_38], %76 {strides = array<i32>} : memref<8x1xf32, #tpu.memory_space<vmem>>, vector<8x1xf32>,
      %cst_39 = arith.constant 0.000000e+00 : f32
      %78 = vector.broadcast %cst_39 : f32 to vector<8x1xf32>
      %c0_40 = arith.constant 0 : index
      %c0_41 = arith.constant 0 : index
      %79 = vector.load %arg8[%c0_40, %c0_41] : memref<8x1xf32, #tpu.memory_space<vmem>>, vector<8x1xf32>
      tpu.vector_store %arg8[%c0_40, %c0_41], %78 {strides = array<i32>} : memref<8x1xf32, #tpu.memory_space<vmem>>, vector<8x1xf32>,
      %cst_42 = arith.constant 0.000000e+00 : f32
      %80 = vector.broadcast %cst_42 : f32 to vector<8x32xf32>
      %c0_43 = arith.constant 0 : index
      %c0_44 = arith.constant 0 : index
      %81 = vector.load %arg9[%c0_43, %c0_44] : memref<8x32xf32, #tpu.memory_space<vmem>>, vector<8x32xf32>
      tpu.vector_store %arg9[%c0_43, %c0_44], %80 {strides = array<i32>} : memref<8x32xf32, #tpu.memory_space<vmem>>, vector<8x32xf32>,
    } else {
    }
    %c0 = arith.constant 0 : index
    %c0_1 = arith.constant 0 : index
    %3 = vector.load %arg4[%c0, %c0_1] : memref<128x32xbf16, #tpu.memory_space<vmem>>, vector<128x32xbf16>
    %c0_2 = arith.constant 0 : index
    %c0_3 = arith.constant 0 : index
    %4 = vector.load %arg6[%c0_2, %c0_3] : memref<8x32xbf16, #tpu.memory_space<vmem>>, vector<8x32xbf16>
    %cst = arith.constant dense<0.000000e+00> : vector<8x128xf32>
    %5 = tpu.matmul %4, %3, %cst {dimension_numbers = #tpu.dot_dimension_numbers<[1], [1], [0], [0], [0, 0, 1, 0], [], []>} : vector<8x32xbf16>, vector<128x32xbf16>, vector<8x128xf32> -> vector<8x128xf32>
    %c128_i32 = arith.constant 128 : i32
    %6 = arith.muli %arg1, %c128_i32 : i32
    %7 = tpu.iota {dimensions = array<i32: 1>} : vector<8x128xi32>
    %8 = vector.broadcast %6 : i32 to vector<8x128xi32>
    %9 = arith.addi %8, %7 : vector<8x128xi32>
    %c16_i32 = arith.constant 16 : i32
    %10 = vector.broadcast %c16_i32 : i32 to vector<8x128xi32>
    %11 = arith.cmpi slt, %9, %10 : vector<8x128xi32>
    %c8_i32 = arith.constant 8 : i32
    %12 = arith.muli %arg0, %c8_i32 : i32
    %13 = tpu.iota {dimensions = array<i32: 0>} : vector<8x1xi32>
    %14 = vector.broadcast %12 : i32 to vector<8x1xi32>
    %15 = arith.addi %14, %13 : vector<8x1xi32>
    %c8_i32_4 = arith.constant 8 : i32
    %16 = vector.broadcast %c8_i32_4 : i32 to vector<8x1xi32>
    %17 = arith.remsi %15, %16 : vector<8x1xi32>
    %18 = vector.broadcast %17 : vector<8x1xi32> to vector<8x128xi32>
    %19 = arith.cmpi sle, %9, %18 : vector<8x128xi32>
    %20 = arith.andi %11, %19 : vector<8x128xi1>
    %cst_5 = arith.constant -1.000000e+30 : f32
    %21 = vector.broadcast %cst_5 : f32 to vector<8x128xf32>
    %22 = arith.select %20, %5, %21 : vector<8x128xi1>, vector<8x128xf32>
    %c0_6 = arith.constant 0 : index
    %c0_7 = arith.constant 0 : index
    %23 = vector.load %arg7[%c0_6, %c0_7] : memref<8x1xf32, #tpu.memory_space<vmem>>, vector<8x1xf32>
    %cst_8 = arith.constant dense<0xFF800000> : vector<8xf32>
    %24 = vector.multi_reduction <maximumf>, %22, %cst_8 [1] : vector<8x128xf32> to vector<8xf32>
    %25 = vector.shape_cast %24 : vector<8xf32> to vector<8x1xf32>
    %26 = arith.maximumf %23, %25 : vector<8x1xf32>
    %27 = arith.subf %23, %26 : vector<8x1xf32>
    %28 = math.exp %27 : vector<8x1xf32>
    %29 = vector.broadcast %26 : vector<8x1xf32> to vector<8x128xf32>
    %30 = arith.subf %22, %29 : vector<8x128xf32>
    %31 = math.exp %30 : vector<8x128xf32>
    %c0_9 = arith.constant 0 : index
    %c0_10 = arith.constant 0 : index
    %32 = vector.load %arg8[%c0_9, %c0_10] : memref<8x1xf32, #tpu.memory_space<vmem>>, vector<8x1xf32>
    %33 = arith.mulf %28, %32 : vector<8x1xf32>
    %cst_11 = arith.constant dense<0.000000e+00> : vector<8xf32>
    %34 = vector.multi_reduction <add>, %31, %cst_11 [1] : vector<8x128xf32> to vector<8xf32>
    %35 = vector.shape_cast %34 : vector<8xf32> to vector<8x1xf32>
    %36 = arith.addf %33, %35 : vector<8x1xf32>
    %c0_12 = arith.constant 0 : index
    %c0_13 = arith.constant 0 : index
    %37 = vector.load %arg8[%c0_12, %c0_13] : memref<8x1xf32, #tpu.memory_space<vmem>>, vector<8x1xf32>
    tpu.vector_store %arg8[%c0_12, %c0_13], %36 {strides = array<i32>} : memref<8x1xf32, #tpu.memory_space<vmem>>, vector<8x1xf32>,
    %c0_14 = arith.constant 0 : index
    %c0_15 = arith.constant 0 : index
    %38 = vector.load %arg9[%c0_14, %c0_15] : memref<8x32xf32, #tpu.memory_space<vmem>>, vector<8x32xf32>
    %39 = vector.broadcast %28 : vector<8x1xf32> to vector<8x32xf32>
    %40 = arith.mulf %39, %38 : vector<8x32xf32>
    %41 = arith.truncf %31 : vector<8x128xf32> to vector<8x128xbf16>
    %cst_16 = arith.constant dense<0.000000e+00> : vector<8x32xf32>
    %42 = tpu.matmul %41, %3, %cst_16 {dimension_numbers = #tpu.dot_dimension_numbers<[1], [0], [0], [1], [0, 0, 1, 1], [], []>} : vector<8x128xbf16>, vector<128x32xbf16>, vector<8x32xf32> -> vector<8x32xf32>
    %43 = arith.addf %40, %42 : vector<8x32xf32>
    %c0_17 = arith.constant 0 : index
    %c0_18 = arith.constant 0 : index
    %44 = vector.load %arg9[%c0_17, %c0_18] : memref<8x32xf32, #tpu.memory_space<vmem>>, vector<8x32xf32>
    tpu.vector_store %arg9[%c0_17, %c0_18], %43 {strides = array<i32>} : memref<8x32xf32, #tpu.memory_space<vmem>>, vector<8x32xf32>,
    %c0_19 = arith.constant 0 : index
    %c0_20 = arith.constant 0 : index
    %45 = vector.load %arg7[%c0_19, %c0_20] : memref<8x1xf32, #tpu.memory_space<vmem>>, vector<8x1xf32>
    tpu.vector_store %arg7[%c0_19, %c0_20], %26 {strides = array<i32>} : memref<8x1xf32, #tpu.memory_space<vmem>>, vector<8x1xf32>,
    %c0_i32_21 = arith.constant 0 : i32
    %46 = arith.cmpi eq, %arg1, %c0_i32_21 : i32
    %47 = arith.extui %46 : i1 to i32
    %c0_i32_22 = arith.constant 0 : i32
    %48 = arith.cmpi ne, %47, %c0_i32_22 : i32
    scf.if %48 {
      %c0_23 = arith.constant 0 : index
      %c0_24 = arith.constant 0 : index
      %49 = vector.load %arg8[%c0_23, %c0_24] : memref<8x1xf32, #tpu.memory_space<vmem>>, vector<8x1xf32>
      %50 = tpu.reciprocal %49 {approx = true} : vector<8x1xf32> -> vector<8x1xf32>
      %c0_25 = arith.constant 0 : index
      %c0_26 = arith.constant 0 : index
      %51 = vector.load %arg9[%c0_25, %c0_26] : memref<8x32xf32, #tpu.memory_space<vmem>>, vector<8x32xf32>
      %52 = vector.broadcast %50 : vector<8x1xf32> to vector<8x32xf32>
      %53 = arith.mulf %51, %52 : vector<8x32xf32>
      %c0_27 = arith.constant 0 : index
      %c0_28 = arith.constant 0 : index
      %54 = vector.load %arg5[%c0_27, %c0_28] : memref<8x32xf32, #tpu.memory_space<vmem>>, vector<8x32xf32>
      tpu.vector_store %arg5[%c0_27, %c0_28], %53 {strides = array<i32>} : memref<8x32xf32, #tpu.memory_space<vmem>>, vector<8x32xf32>,
    } else {
    }
    return
  }
  func.func @transform_0(%arg0: i32, %arg1: i32) -> (i32, i32) {
    %c0_i32 = arith.constant 0 : i32
    %c0_i32_0 = arith.constant 0 : i32
    return %arg0, %c0_i32 : i32, i32
  }
  func.func @transform_1(%arg0: i32, %arg1: i32) -> (i32, i32) {
    %c0_i32 = arith.constant 0 : i32
    %c0_i32_0 = arith.constant 0 : i32
    %c0_i32_1 = arith.constant 0 : i32
    return %c0_i32, %c0_i32_0 : i32, i32
  }
  func.func @transform_2(%arg0: i32, %arg1: i32) -> (i32, i32) {
    %c0_i32 = arith.constant 0 : i32
    %c0_i32_0 = arith.constant 0 : i32
    return %arg1, %c0_i32 : i32, i32
  }
  func.func @transform_3(%arg0: i32, %arg1: i32) -> (i32, i32) {
    %c0_i32 = arith.constant 0 : i32
    %c0_i32_0 = arith.constant 0 : i32
    return %arg0, %c0_i32 : i32, i32
  }
}

</mosaic_0001>

<llo_original>
// kernel: tpu_custom_call.1
$region0: #{tpu_custom_call.1}
  #allocation0 [shape = 'u32[]', space=smem, size = 0x4, offset = 0x4, fixed_abs, tag = 'smem constant byte address 0x4 - core index']
  #allocation1 [shape = 'u32[144,128]{1,0:T(1,128)}', space=vmem, size = 0x12000, scoped, tag = 'internal scratch']
  #allocation2 [shape = 'bf16[8,32]{1,0:T(8,128)(2,1)}', space=vmem, size = 0x800, scoped, tag = 'scratch operand']
  #allocation3 [shape = 'f32[8,1]{1,0:T(8,128)}', space=vmem, size = 0x1000, scoped, tag = 'scratch operand']
  #allocation4 [shape = 'f32[8,1]{1,0:T(8,128)}', space=vmem, size = 0x1000, scoped, tag = 'scratch operand']
  #allocation5 [shape = 'f32[8,32]{1,0:T(8,128)}', space=vmem, size = 0x1000, scoped, tag = 'scratch operand']
  %s0 = inlined_call_operand.vmem [shape: f32[16,32], index: 0, kind: input, shape index: {}]
  %s1 = inlined_call_operand.vmem [shape: f32[2,32], index: 1, kind: input, shape index: {}]
  %s2 = inlined_call_operand.vmem [shape: bf16[128,32], index: 2, kind: input, shape index: {}]
  %s3 = inlined_call_operand.hbm [shape: f32[16,32], index: 3, kind: output, shape index: {}]
  %s4 = sld [smem:[#allocation0]]
  $region53: #{tpu_custom_call.1} parent=0
    _
  %s6 = ssub.s32 1, %s4
  %s7 = scalar_select 0, %s6, %s4
  $region1: #{tpu_custom_call.1} parent=0
    #allocation6 [shape = 'u8[8192]{0}', space=vmem, size = 0x2000, scoped, tag = 'output window, operand 0']
    #allocation7 [shape = 's32[2]{0}', space=sflag, size = 0x8, scoped, tag = 'scoped memory for tpu_custom_call.1']
    %8 = vsyncpa [#allocation7], 0
    %s9 = scalar_lea.sflag [#allocation7], 1
    %10 = vsyncpa %s9, 0
    loop: start=0, step=1, limit=4
    $region2: #{tpu_custom_call.1} parent=1 // loop_pre_header
      _
    $region3: #{tpu_custom_call.1} parent=1 // loop_header
      %s12 = sphi 0, %s16
      %p13 = scmp.ge.s32.totalorder %s12, 4
      %s19 = sphi 0, %s31
      %s20 = sphi 0, %s27
      %s21 = sphi 0, %s19
      %s22 = sphi 0, %s20
      %s23 = sphi 0, %s21
      %s24 = sphi 0, %s22
      %s34 = sphi 0, %s36
      %s37 = sphi 0, %s34
      %s38 = sphi 0, %s37
      %s54 = sphi 0, %s38
      %s58 = sphi 0, %s58
      %s60 = sphi 0, %s58
      %s61 = sphi 0, %s60
      %s75 = sphi 0, %s61
      %s81 = sphi 0, %s83
      %s84 = sphi 0, %s81
      %s85 = sphi 0, %s84
      %s101 = sphi 0, %s85
      %s107 = sphi 0, %s109
      %s110 = sphi 0, %s107
      %s111 = sphi 0, %s110
      %s127 = sphi 0, %s111
    $region4: #{tpu_custom_call.1} parent=1 // loop_header_branch
      %15 = sbr.rel (%p13) target = $region8
    $region5: #{tpu_custom_call.1} parent=1 // loop_body
      %s17 = ssub.s32 %s12, 1
      %s18 = ssub.s32 %s12, 2
      %s25 = sadd.s32 1, %s20
      %p26 = scmp.ge.s32.totalorder %s25, 1
      %s27 = scalar_select %p26, 0, %s25
      %s28 = sadd.s32 1, %s19
      %s29 = scalar_select %p26, %s28, %s19
      %p30 = scmp.ge.s32.totalorder %s29, 2
      %s31 = scalar_select %p30, 0, %s29
      %s32 = ssub.s32 %s19, %s31
      %p33 = scmp.eq.s32.totalorder %s32, 0
      %s35 = sadd.s32 %s34, 1
      %s36 = scalar_select %p33, %s34, %s35
      %p39 = pneg %p33
      %p40 = scmp.eq.s32.totalorder %s12, 1
      %p41 = por %p39, %p40
      %p42 = scmp.ne.s32.totalorder %s34, %s37
      %p43 = scmp.eq.s32.totalorder %s12, 0
      %p44 = por %p42, %p43
      %p45 = scmp.ne.s32.totalorder %s34, %s37
      %p46 = scmp.eq.s32.totalorder %s17, 1
      %p47 = por %p45, %p46
      %p48 = scmp.ne.s32.totalorder %s37, %s38
      %p49 = scmp.eq.s32.totalorder %s17, 0
      %p50 = por %p48, %p49
      %p51 = scmp.ne.s32.totalorder %s37, %s38
      %p52 = scmp.eq.s32.totalorder %s18, 1
      %p53 = por %p51, %p52
      %p55 = scmp.ne.s32.totalorder %s38, %s54
      %p56 = scmp.eq.s32.totalorder %s18, 0
      %p57 = por %p55, %p56
      %s59 = sadd.s32 %s58, 1
      %p62 = scmp.eq.s32.totalorder %s12, 1
      %p63 = scmp.ne.s32.totalorder %s58, %s60
      %p64 = scmp.eq.s32.totalorder %s12, 0
      %p65 = por %p63, %p64
      %p66 = scmp.ne.s32.totalorder %s58, %s60
      %p67 = scmp.eq.s32.totalorder %s17, 1
      %p68 = por %p66, %p67
      %p69 = scmp.ne.s32.totalorder %s60, %s61
      %p70 = scmp.eq.s32.totalorder %s17, 0
      %p71 = por %p69, %p70
      %p72 = scmp.ne.s32.totalorder %s60, %s61
      %p73 = scmp.eq.s32.totalorder %s18, 1
      %p74 = por %p72, %p73
      %p76 = scmp.ne.s32.totalorder %s61, %s75
      %p77 = scmp.eq.s32.totalorder %s18, 0
      %p78 = por %p76, %p77
      %s79 = ssub.s32 %s20, %s27
      %p80 = scmp.eq.s32.totalorder %s79, 0
      %s82 = sadd.s32 %s81, 1
      %s83 = scalar_select %p80, %s81, %s82
      %p86 = pneg %p80
      %p87 = scmp.eq.s32.totalorder %s12, 1
      %p88 = por %p86, %p87
      %p89 = scmp.ne.s32.totalorder %s81, %s84
      %p90 = scmp.eq.s32.totalorder %s12, 0
      %p91 = por %p89, %p90
      %p92 = scmp.ne.s32.totalorder %s81, %s84
      %p93 = scmp.eq.s32.totalorder %s17, 1
      %p94 = por %p92, %p93
      %p95 = scmp.ne.s32.totalorder %s84, %s85
      %p96 = scmp.eq.s32.totalorder %s17, 0
      %p97 = por %p95, %p96
      %p98 = scmp.ne.s32.totalorder %s84, %s85
      %p99 = scmp.eq.s32.totalorder %s18, 1
      %p100 = por %p98, %p99
      %p102 = scmp.ne.s32.totalorder %s85, %s101
      %p103 = scmp.eq.s32.totalorder %s18, 0
      %p104 = por %p102, %p103
      %s105 = ssub.s32 %s19, %s31
      %p106 = scmp.eq.s32.totalorder %s105, 0
      %s108 = sadd.s32 %s107, 1
      %s109 = scalar_select %p106, %s107, %s108
      %p112 = pneg %p106
      %p113 = scmp.eq.s32.totalorder %s12, 1
      %p114 = por %p112, %p113
      %p115 = scmp.ne.s32.totalorder %s107, %s110
      %p116 = scmp.eq.s32.totalorder %s12, 0
      %p117 = por %p115, %p116
      %p118 = scmp.ne.s32.totalorder %s107, %s110
      %p119 = scmp.eq.s32.totalorder %s17, 1
      %p120 = por %p118, %p119
      %p121 = scmp.ne.s32.totalorder %s110, %s111
      %p122 = scmp.eq.s32.totalorder %s17, 0
      %p123 = por %p121, %p122
      %p124 = scmp.ne.s32.totalorder %s110, %s111
      %p125 = scmp.eq.s32.totalorder %s18, 1
      %p126 = por %p124, %p125
      %p128 = scmp.ne.s32.totalorder %s111, %s127
      %p129 = scmp.eq.s32.totalorder %s18, 0
      %p130 = por %p128, %p129
      %p131 = scmp.le.s32.totalorder 1, %s12
      %p132 = scmp.lt.s32.totalorder %s12, 3
      %p133 = pnand %p131, %p132
      %p134 = pneg %p133
      // Predicated region
      $region9: #{tpu_custom_call.1} parent=5 // pred_check
        _
      $region10: #{tpu_custom_call.1} parent=5 // pred_check_branch
        %136 = sbr.rel (%p133) target = $region12
      $region11: #{tpu_custom_call.1} parent=5 // pred_region
        %s137 = ssub.s32 %s12, 1
        // Predicated region
        $region13: #{tpu_custom_call.1} parent=11 // pred_check
          %p138 = pneg %p71
        $region14: #{tpu_custom_call.1} parent=11 // pred_check_branch
          %140 = sbr.rel (%p138) target = $region16
        $region15: #{tpu_custom_call.1} parent=11 // pred_region
          _
        $region16: #{tpu_custom_call.1} parent=11 // pred_fallthru
          _
        // Predicated region
        $region17: #{tpu_custom_call.1} parent=11 // pred_check
          %p141 = pneg %p97
        $region18: #{tpu_custom_call.1} parent=11 // pred_check_branch
          %143 = sbr.rel (%p141) target = $region20
        $region19: #{tpu_custom_call.1} parent=11 // pred_region
          %s144 = smul.u32 16, %s22
          %p145 = scmp.lt.s32.totalorder %s144, 15
          %s146 = scalar_select %p145, %s144, 15
          %s147 = smul.addr %s146, 4
          %s148 = scalar_lea.vmem %s2, %s147
          %s149 = smul.u32 16, %s22
        $region20: #{tpu_custom_call.1} parent=11 // pred_fallthru
          _
      $region12: #{tpu_custom_call.1} parent=5 // pred_fallthru
        _
      %p150 = scmp.lt.s32.totalorder %s12, 2
      // Predicated region
      $region21: #{tpu_custom_call.1} parent=5 // pred_check
        %p151 = pneg %p150
      $region22: #{tpu_custom_call.1} parent=5 // pred_check_branch
        %153 = sbr.rel (%p151) target = $region24
      $region23: #{tpu_custom_call.1} parent=5 // pred_region
        // Predicated region
        $region25: #{tpu_custom_call.1} parent=23 // pred_check
          %p154 = pneg %p44
        $region26: #{tpu_custom_call.1} parent=23 // pred_check_branch
          %156 = sbr.rel (%p154) target = $region28
        $region27: #{tpu_custom_call.1} parent=23 // pred_region
          %p157 = scmp.lt.s32.totalorder %s19, 1
          %s158 = scalar_select %p157, %s19, 1
          %s159 = smul.addr %s158, 8
          %s160 = scalar_lea.vmem %s0, %s159
        $region28: #{tpu_custom_call.1} parent=23 // pred_fallthru
          _
      $region24: #{tpu_custom_call.1} parent=5 // pred_fallthru
        _
      %p161 = scmp.le.s32.totalorder 1, %s12
      %p162 = scmp.lt.s32.totalorder %s12, 3
      %p163 = pnand %p161, %p162
      %p164 = pneg %p163
      // Predicated region
      $region29: #{tpu_custom_call.1} parent=5 // pred_check
        _
      $region30: #{tpu_custom_call.1} parent=5 // pred_check_branch
        %166 = sbr.rel (%p163) target = $region32
      $region31: #{tpu_custom_call.1} parent=5 // pred_region
        %s167 = ssub.s32 %s12, 1
        %p168 = scmp.lt.s32.totalorder %s21, 1
        %s169 = scalar_select %p168, %s21, 1
        %s170 = smul.addr %s169, 8
        %s171 = scalar_lea.vmem %s0, %s170
        %p172 = pneg %p50
        %p173 = pneg %p47
        %p174 = pneg %p71
        %p175 = pneg %p68
        %s176 = smul.u32 16, %s22
        %p177 = scmp.lt.s32.totalorder %s176, 15
        %s178 = scalar_select %p177, %s176, 15
        %s179 = smul.addr %s178, 4
        %s180 = scalar_lea.vmem %s2, %s179
        %p181 = pneg %p97
        %p182 = pneg %p94
        %p183 = pneg %p123
        %p184 = pneg %p120
        %s185 = sand.u32 %s110, 1
        %s186 = scalar_lea.sflag [#allocation7], %s185
        %s187 = sand.u32 %s110, 1
        %s188 = smul.addr %s187, 8
        %s189 = scalar_lea.vmem [#allocation6], %s188
        %p190 = scmp.lt.s32.totalorder %s21, 1
        %s191 = scalar_select %p190, %s21, 1
        %s192 = smul.addr %s191, 8
        %s193 = scalar_lea.vmem %s0, %s192
        %s194 = smul.u32 16, %s22
        %p195 = scmp.lt.s32.totalorder %s194, 15
        %s196 = scalar_select %p195, %s194, 15
        %s197 = smul.addr %s196, 4
        %s198 = scalar_lea.vmem %s2, %s197
        %s199 = smul.u32 16, %s22
        %p201 = scmp.eq.s32.totalorder %s22, 0
        // Predicated region
        $region33: #{tpu_custom_call.1} parent=31 // pred_check
          %p202 = pneg %p201
        $region34: #{tpu_custom_call.1} parent=31 // pred_check_branch
          %204 = sbr.rel (%p202) target = $region36
        $region35: #{tpu_custom_call.1} parent=31 // pred_region
          %v205 = vld [vmem:[%s193] sm:$0xff]
          %v206 = vld [vmem:[%s1] sm:$0x1]
          %v207 = vld [vmem:[%s1 + $0x1] sm:$0x1]
          %vm208 = vcmask 261120
          %v209 = vsel %vm208, %v205, 0.0
          %210 = vadd.xlane.f32.xlu0 %v209
          %v211 = vpop.xlane.xlu0 %210
          %v212 = vmul.f32 %v211, 0.03125
          %v213 = vsub.f32 %v205, %v212
          %v214 = vmul.f32 %v213, %v213
          %v215 = vsel %vm208, %v214, 0.0
          %216 = vadd.xlane.f32.xlu0 %v215
          %v217 = vpop.xlane.xlu0 %216
          %v218 = vmul.f32 %v217, 0.03125
          %v219 = vadd.f32 %v218, 1e-05
          %v220 = vrsqrt.pop %v219
          %v221 = vmul.f32 %v213, %v220
          %v222 = vlaneseq
          %v223 = vshrl.u32 %v222, 7
          %v224 = vsub.s32 0, %v223
          %v225 = vrot.slane %v206, %v224
          %v226 = vmul.f32 %v221, %v225
          %v227 = vlaneseq
          %v228 = vshrl.u32 %v227, 7
          %v229 = vsub.s32 0, %v228
          %v230 = vrot.slane %v207, %v229
          %v231 = vadd.f32 %v226, %v230
          %v232 = vmul.f32 %v231, 0.17677669
          %v233 = vpack.c.bf16 %v232, %v232
          %vm234 = vcmask 257024
          %235 = vst.msk [vmem:[#allocation2] sm:$0xf] %vm234, %v233
          %vm236 = vcmask 7168
          %237 = vst.msk [vmem:[#allocation3] sm:$0xff] %vm236, -inf
          %238 = vst.msk [vmem:[#allocation4] sm:$0xff] %vm236, 0.0
          %239 = vst.msk [vmem:[#allocation5] sm:$0xff] %vm208, 0.0
        $region36: #{tpu_custom_call.1} parent=31 // pred_fallthru
          _
        %v240 = vld [vmem:[%s198] sm:$0xf]
        %v241 = vld [vmem:[%s198 + $0x4] sm:$0xf]
        %v242 = vld [vmem:[%s198 + $0x8] sm:$0xf]
        %v243 = vld [vmem:[%s198 + $0xc] sm:$0xf]
        %v244 = vld [vmem:[%s198 + $0x10] sm:$0xf]
        %v245 = vld [vmem:[%s198 + $0x14] sm:$0xf]
        %v246 = vld [vmem:[%s198 + $0x18] sm:$0xf]
        %v247 = vld [vmem:[%s198 + $0x1c] sm:$0xf]
        %v248 = vld [vmem:[%s198 + $0x20] sm:$0xf]
        %v249 = vld [vmem:[%s198 + $0x24] sm:$0xf]
        %v250 = vld [vmem:[%s198 + $0x28] sm:$0xf]
        %v251 = vld [vmem:[%s198 + $0x2c] sm:$0xf]
        %v252 = vld [vmem:[%s198 + $0x30] sm:$0xf]
        %v253 = vld [vmem:[%s198 + $0x34] sm:$0xf]
        %v254 = vld [vmem:[%s198 + $0x38] sm:$0xf]
        %v255 = vld [vmem:[%s198 + $0x3c] sm:$0xf]
        %v256 = vld [vmem:[#allocation2] sm:$0xf]
        %v273 = vunpack.c.l.b16 %v240
        %v274 = vunpack.c.l.b16 %v241
        %v275 = vunpack.c.l.b16 %v242
        %v276 = vunpack.c.l.b16 %v243
        %v277 = vunpack.c.l.b16 %v244
        %v278 = vunpack.c.l.b16 %v245
        %v279 = vunpack.c.l.b16 %v246
        %v280 = vunpack.c.l.b16 %v247
        %v281 = vunpack.c.l.b16 %v248
        %v282 = vunpack.c.l.b16 %v249
        %v283 = vunpack.c.l.b16 %v250
        %v284 = vunpack.c.l.b16 %v251
        %v285 = vunpack.c.l.b16 %v252
        %v286 = vunpack.c.l.b16 %v253
        %v287 = vunpack.c.l.b16 %v254
        %v288 = vunpack.c.l.b16 %v255
        %v289 = vpack.c.b16 %v274, %v273
        %v290 = vpack.c.b16 %v276, %v275
        %v291 = vpack.c.b16 %v278, %v277
        %v292 = vpack.c.b16 %v280, %v279
        %v293 = vpack.c.b16 %v282, %v281
        %v294 = vpack.c.b16 %v284, %v283
        %v295 = vpack.c.b16 %v286, %v285
        %v296 = vpack.c.b16 %v288, %v287
        %vm297 = vcmask 261120
        %v299 = vsel %vm297, %v256, 0
        %v302 = vsel %vm297, %v289, 0
        %v305 = vsel %vm297, %v290, 0
        %v308 = vsel %vm297, %v291, 0
        %v311 = vsel %vm297, %v292, 0
        %v314 = vsel %vm297, %v293, 0
        %v317 = vsel %vm297, %v294, 0
        %v320 = vsel %vm297, %v295, 0
        %v323 = vsel %vm297, %v296, 0
        %325 = vmatprep.subr.bf16.mxu0 0
        %326 = vmatpush1.bf16.xpose.msra.mxu0 %v302
        %327 = vmatprep.subr.bf16.mxu0 0
        %328 = vmatpush1.bf16.xpose.msra.mxu0 %v305
        %329 = vmatprep.subr.bf16.mxu0 0
        %330 = vmatpush1.bf16.xpose.msra.mxu0 %v308
        %331 = vmatprep.subr.bf16.mxu0 0
        %332 = vmatpush1.bf16.xpose.msra.mxu0 %v311
        %333 = vmatprep.subr.bf16.mxu0 0
        %334 = vmatpush1.bf16.xpose.msra.mxu0 %v314
        %335 = vmatprep.subr.bf16.mxu0 0
        %336 = vmatpush1.bf16.xpose.msra.mxu0 %v317
        %337 = vmatprep.subr.bf16.mxu0 0
        %338 = vmatpush1.bf16.xpose.msra.mxu0 %v320
        %339 = vmatprep.subr.bf16.mxu0 0
        %340 = vmatpush1.bf16.xpose.msra.mxu0 %v323
        %341 = vmatprep.subr.bf16.mxu0 0
        %342 = vmatpush1.bf16.xpose.msra.mxu0 0
        %343 = vmatprep.subr.bf16.mxu0 0
        %344 = vmatpush1.bf16.xpose.msra.mxu0 0
        %345 = vmatprep.subr.bf16.mxu0 0
        %346 = vmatpush1.bf16.xpose.msra.mxu0 0
        %347 = vmatprep.subr.bf16.mxu0 0
        %348 = vmatpush1.bf16.xpose.msra.mxu0 0
        %349 = vmatprep.subr.bf16.mxu0 0
        %350 = vmatpush1.bf16.xpose.msra.mxu0 0
        %351 = vmatprep.subr.bf16.mxu0 0
        %352 = vmatpush1.bf16.xpose.msra.mxu0 0
        %353 = vmatprep.subr.bf16.mxu0 0
        %354 = vmatpush1.bf16.xpose.msra.mxu0 0
        %355 = vmatprep.subr.bf16.mxu0 0
        %356 = vmatpush1.bf16.xpose.msra.mxu0 0
        %357 = vmatprep.mubr.bf16.mxu0 0
        %358 = vmatmul.mubr.bf16.gmra.mrb[0].mxu0 %v299
        %v359 = vpop.f32.mrb[0].mxu0
        %v360 = vadd.f32 0.0, %v359
        %v361 = vpop.f32.mrb[0].mxu0
        %v362 = vpop.f32.mrb[0].mxu0
        %v363 = vpop.f32.mrb[0].mxu0
        %364 = vdwg.mxu0
        %s365 = smul.u32 %s22, 128
        %v366 = vlaneseq
        %v367 = vand.u32 %v366, 127
        %v368 = vstv %s365
        %v369 = vadd.s32 %v368, %v367
        %vm370 = vcmp.lt.s32.totalorder %v369, 16
        %s371 = smul.u32 %s21, 8
        %v372 = vlaneseq
        %v373 = vshrl.u32 %v372, 7
        %v374 = vstv %s371
        %v375 = vadd.s32 %v374, %v373
        %vm376 = vcmp.lt.s32.totalorder %v375, 0
        %v377 = vsub.s32 0, %v375
        %v378 = vsel %vm376, %v377, %v375
        %v379 = vshrl.u32 %v378, 3
        %v380 = vand.u32 %v378, 7
        %v381 = vsub.s32 0, %v380
        %v382 = vsel %vm376, %v381, %v380
        %vm383 = vcmp.le.s32.totalorder %v369, %v382
        %vm384 = vmand %vm370, %vm383
        %v385 = vsel %vm384, %v360, -1e+30
        %v386 = vld [vmem:[#allocation3] sm:$0xff]
        %387 = vmax.xlane.f32.xlu0 %v385
        %v388 = vpop.xlane.xlu0 %387
        %v389 = vmax.f32 %v386, %v388
        %v390 = vsub.f32 %v386, %v389
        %v391 = vmul.f32 %v390, 1.442695
        %v392 = vpow.pop %v391
        %394 = vset.pattern.permute.xlu0 0
        %395 = vperm.xlu0 %394, %v389
        %v396 = vpop.permute.xlu0 %395
        %v398 = vsub.f32 %v385, %v396
        %v399 = vmul.f32 %v398, 1.442695
        %v400 = vpow.pop %v399
        %v401 = vld [vmem:[#allocation4] sm:$0xff]
        %v402 = vmul.f32 %v392, %v401
        %403 = vadd.xlane.f32.xlu0 %v400
        %v404 = vpop.xlane.xlu0 %403
        %v405 = vadd.f32 %v402, %v404
        %vm406 = vcmask 7168
        %407 = vst.msk [vmem:[#allocation4] sm:$0xff] %vm406, %v405
        %v408 = vld [vmem:[#allocation5] sm:$0xff]
        %410 = vset.pattern.permute.xlu0 0
        %411 = vperm.xlu0 %410, %v392
        %v412 = vpop.permute.xlu0 %411
        %v414 = vmul.f32 %v412, %v408
        %v415 = vpack.c.bf16 %v400, %v400
        %424 = vmatprep.subr.bf16.mxu0 0
        %425 = vmatpush1.bf16.msra.mxu0 %v289
        %426 = vmatprep.subr.bf16.mxu0 0
        %427 = vmatpush1.bf16.msra.mxu0 %v290
        %428 = vmatprep.subr.bf16.mxu0 0
        %429 = vmatpush1.bf16.msra.mxu0 %v291
        %430 = vmatprep.subr.bf16.mxu0 0
        %431 = vmatpush1.bf16.msra.mxu0 %v292
        %432 = vmatprep.subr.bf16.mxu0 0
        %433 = vmatpush1.bf16.msra.mxu0 %v293
        %434 = vmatprep.subr.bf16.mxu0 0
        %435 = vmatpush1.bf16.msra.mxu0 %v294
        %436 = vmatprep.subr.bf16.mxu0 0
        %437 = vmatpush1.bf16.msra.mxu0 %v295
        %438 = vmatprep.subr.bf16.mxu0 0
        %439 = vmatpush1.bf16.msra.mxu0 %v296
        %440 = vmatprep.subr.bf16.mxu0 0
        %441 = vmatpush1.bf16.msra.mxu0 0
        %442 = vmatprep.subr.bf16.mxu0 0
        %443 = vmatpush1.bf16.msra.mxu0 0
        %444 = vmatprep.subr.bf16.mxu0 0
        %445 = vmatpush1.bf16.msra.mxu0 0
        %446 = vmatprep.subr.bf16.mxu0 0
        %447 = vmatpush1.bf16.msra.mxu0 0
        %448 = vmatprep.subr.bf16.mxu0 0
        %449 = vmatpush1.bf16.msra.mxu0 0
        %450 = vmatprep.subr.bf16.mxu0 0
        %451 = vmatpush1.bf16.msra.mxu0 0
        %452 = vmatprep.subr.bf16.mxu0 0
        %453 = vmatpush1.bf16.msra.mxu0 0
        %454 = vmatprep.subr.bf16.mxu0 0
        %455 = vmatpush1.bf16.msra.mxu0 0
        %456 = vmatprep.mubr.bf16.mxu0 0
        %457 = vmatmul.mubr.bf16.gmra.mrb[0].mxu0 %v415
        %v458 = vpop.f32.mrb[0].mxu0
        %v459 = vadd.f32 0.0, %v458
        %v460 = vpop.f32.mrb[0].mxu0
        %v461 = vpop.f32.mrb[0].mxu0
        %v462 = vpop.f32.mrb[0].mxu0
        %463 = vdwg.mxu0
        %v464 = vadd.f32 %v414, %v459
        %465 = vst.msk [vmem:[#allocation5] sm:$0xff] %vm297, %v464
        %466 = vst.msk [vmem:[#allocation3] sm:$0xff] %vm406, %v389
        // Predicated region
        $region37: #{tpu_custom_call.1} parent=31 // pred_check
          %p467 = pneg %p201
        $region38: #{tpu_custom_call.1} parent=31 // pred_check_branch
          %469 = sbr.rel (%p467) target = $region40
        $region39: #{tpu_custom_call.1} parent=31 // pred_region
          %v470 = vld [vmem:[#allocation4] sm:$0xff]
          %v471 = vrcp.pop %v470
          %v472 = vld [vmem:[#allocation5] sm:$0xff]
          %474 = vset.pattern.permute.xlu0 0
          %475 = vperm.xlu0 %474, %v471
          %v476 = vpop.permute.xlu0 %475
          %v478 = vmul.f32 %v472, %v476
          %479 = vst.msk [vmem:[%s189] sm:$0xff] %vm297, %v478
        $region40: #{tpu_custom_call.1} parent=31 // pred_fallthru
          _
        %s480 = sand.u32 %s110, 1
        %s481 = scalar_lea.sflag [#allocation7], %s480
        %s482 = sand.u32 %s110, 1
        %s483 = smul.addr %s482, 8
        %s484 = scalar_lea.vmem [#allocation6], %s483
        // Predicated region
        $region41: #{tpu_custom_call.1} parent=31 // pred_check
          %p485 = pneg %p120
        $region42: #{tpu_custom_call.1} parent=31 // pred_check_branch
          %487 = sbr.rel (%p485) target = $region44
        $region43: #{tpu_custom_call.1} parent=31 // pred_region
          %s489 = ssub.s32 128, 128
          %490 = vsyncadd %s481, %s489
          %s491 = smul.addr %s21, 128
          %s492 = scalar_lea.hbm %s3, %s491
          %s494 = sshll.u32 %s484, 4
          %s495 = int_to_ptr.vmem [resolvable:$true] %s494
          %497 = dma.vmem_to_hbm [thread:$0]  %s495, 128, %s492, %s481
        $region44: #{tpu_custom_call.1} parent=31 // pred_fallthru
          _
      $region32: #{tpu_custom_call.1} parent=5 // pred_fallthru
        _
      %p498 = scmp.le.s32.totalorder 2, %s12
      // Predicated region
      $region45: #{tpu_custom_call.1} parent=5 // pred_check
        %p499 = pneg %p498
      $region46: #{tpu_custom_call.1} parent=5 // pred_check_branch
        %501 = sbr.rel (%p499) target = $region48
      $region47: #{tpu_custom_call.1} parent=5 // pred_region
        %s502 = ssub.s32 %s12, 2
        // Predicated region
        $region49: #{tpu_custom_call.1} parent=47 // pred_check
          %p503 = pneg %p126
        $region50: #{tpu_custom_call.1} parent=47 // pred_check_branch
          %505 = sbr.rel (%p503) target = $region52
        $region51: #{tpu_custom_call.1} parent=47 // pred_region
          %s506 = sand.u32 %s111, 1
          %s507 = scalar_lea.sflag [#allocation7], %s506
          %s508 = sand.u32 %s111, 1
          %s509 = smul.addr %s508, 8
          %s510 = scalar_lea.vmem [#allocation6], %s509
          %511 = dma.done %s507, 128
        $region52: #{tpu_custom_call.1} parent=47 // pred_fallthru
          _
      $region48: #{tpu_custom_call.1} parent=5 // pred_fallthru
        _
    $region6: #{tpu_custom_call.1} parent=1 // loop_footer
      %s16 = sadd.s32 1, %s12
    $region7: #{tpu_custom_call.1} parent=1 // loop_footer_branch
      %11 = sbr.rel target = $region3
    $region8: #{tpu_custom_call.1} parent=1 // loop_exit
      _
    %512 = vsyncpa [#allocation7], 1
    %s513 = scalar_lea.sflag [#allocation7], 1
    %514 = vsyncpa %s513, 1

// kernel: tpu_custom_call.1
$region0: #{tpu_custom_call.1}
  #allocation0 [shape = 'u32[]', space=smem, size = 0x4, offset = 0x4, fixed_abs, tag = 'smem constant byte address 0x4 - core index']
  #allocation1 [shape = 'u32[144,128]{1,0:T(1,128)}', space=vmem, size = 0x12000, scoped, tag = 'internal scratch']
  #allocation2 [shape = 'bf16[8,32]{1,0:T(8,128)(2,1)}', space=vmem, size = 0x800, scoped, tag = 'scratch operand']
  #allocation3 [shape = 'f32[8,1]{1,0:T(8,128)}', space=vmem, size = 0x1000, scoped, tag = 'scratch operand']
  #allocation4 [shape = 'f32[8,1]{1,0:T(8,128)}', space=vmem, size = 0x1000, scoped, tag = 'scratch operand']
  #allocation5 [shape = 'f32[8,32]{1,0:T(8,128)}', space=vmem, size = 0x1000, scoped, tag = 'scratch operand']
  %s0 = inlined_call_operand.vmem [shape: f32[16,32], index: 0, kind: input, shape index: {}]
  %s1 = inlined_call_operand.vmem [shape: f32[2,32], index: 1, kind: input, shape index: {}]
  %s2 = inlined_call_operand.vmem [shape: bf16[128,32], index: 2, kind: input, shape index: {}]
  %s3 = inlined_call_operand.hbm [shape: f32[16,32], index: 3, kind: output, shape index: {}]
  %s4 = sld [smem:[#allocation0]]
  $region53: #{tpu_custom_call.1} parent=0
    _
  %s6 = ssub.s32 1, %s4
  %s7 = scalar_select 0, %s6, %s4
  $region1: #{tpu_custom_call.1} parent=0
    #allocation6 [shape = 'u8[8192]{0}', space=vmem, size = 0x2000, scoped, tag = 'output window, operand 0']
    #allocation7 [shape = 's32[2]{0}', space=sflag, size = 0x8, scoped, tag = 'scoped memory for tpu_custom_call.1']
    %8 = vsyncpa [#allocation7], 0
    %s9 = scalar_lea.sflag [#allocation7], 1
    %10 = vsyncpa %s9, 0
    loop: start=0, step=1, limit=4
    $region2: #{tpu_custom_call.1} parent=1 // loop_pre_header
      _
    $region3: #{tpu_custom_call.1} parent=1 // loop_header
      %s12 = sphi 0, %s16
      %p13 = scmp.ge.s32.totalorder %s12, 4
      %s19 = sphi 0, %s31
      %s20 = sphi 0, %s27
      %s21 = sphi 0, %s19
      %s22 = sphi 0, %s20
      %s23 = sphi 0, %s21
      %s24 = sphi 0, %s22
      %s34 = sphi 0, %s36
      %s37 = sphi 0, %s34
      %s38 = sphi 0, %s37
      %s54 = sphi 0, %s38
      %s58 = sphi 0, %s58
      %s60 = sphi 0, %s58
      %s61 = sphi 0, %s60
      %s75 = sphi 0, %s61
      %s81 = sphi 0, %s83
      %s84 = sphi 0, %s81
      %s85 = sphi 0, %s84
      %s101 = sphi 0, %s85
      %s107 = sphi 0, %s109
      %s110 = sphi 0, %s107
      %s111 = sphi 0, %s110
      %s127 = sphi 0, %s111
    $region4: #{tpu_custom_call.1} parent=1 // loop_header_branch
      %15 = sbr.rel (%p13) target = $region8
    $region5: #{tpu_custom_call.1} parent=1 // loop_body
      %s17 = ssub.s32 %s12, 1
      %s18 = ssub.s32 %s12, 2
      %s25 = sadd.s32 1, %s20
      %p26 = scmp.ge.s32.totalorder %s25, 1
      %s27 = scalar_select %p26, 0, %s25
      %s28 = sadd.s32 1, %s19
      %s29 = scalar_select %p26, %s28, %s19
      %p30 = scmp.ge.s32.totalorder %s29, 2
      %s31 = scalar_select %p30, 0, %s29
      %s32 = ssub.s32 %s19, %s31
      %p33 = scmp.eq.s32.totalorder %s32, 0
      %s35 = sadd.s32 %s34, 1
      %s36 = scalar_select %p33, %s34, %s35
      %p39 = pneg %p33
      %p40 = scmp.eq.s32.totalorder %s12, 1
      %p41 = por %p39, %p40
      %p42 = scmp.ne.s32.totalorder %s34, %s37
      %p43 = scmp.eq.s32.totalorder %s12, 0
      %p44 = por %p42, %p43
      %p45 = scmp.ne.s32.totalorder %s34, %s37
      %p46 = scmp.eq.s32.totalorder %s17, 1
      %p47 = por %p45, %p46
      %p48 = scmp.ne.s32.totalorder %s37, %s38
      %p49 = scmp.eq.s32.totalorder %s17, 0
      %p50 = por %p48, %p49
      %p51 = scmp.ne.s32.totalorder %s37, %s38
      %p52 = scmp.eq.s32.totalorder %s18, 1
      %p53 = por %p51, %p52
      %p55 = scmp.ne.s32.totalorder %s38, %s54
      %p56 = scmp.eq.s32.totalorder %s18, 0
      %p57 = por %p55, %p56
      %s59 = sadd.s32 %s58, 1
      %p62 = scmp.eq.s32.totalorder %s12, 1
      %p63 = scmp.ne.s32.totalorder %s58, %s60
      %p64 = scmp.eq.s32.totalorder %s12, 0
      %p65 = por %p63, %p64
      %p66 = scmp.ne.s32.totalorder %s58, %s60
      %p67 = scmp.eq.s32.totalorder %s17, 1
      %p68 = por %p66, %p67
      %p69 = scmp.ne.s32.totalorder %s60, %s61
      %p70 = scmp.eq.s32.totalorder %s17, 0
      %p71 = por %p69, %p70
      %p72 = scmp.ne.s32.totalorder %s60, %s61
      %p73 = scmp.eq.s32.totalorder %s18, 1
      %p74 = por %p72, %p73
      %p76 = scmp.ne.s32.totalorder %s61, %s75
      %p77 = scmp.eq.s32.totalorder %s18, 0
      %p78 = por %p76, %p77
      %s79 = ssub.s32 %s20, %s27
      %p80 = scmp.eq.s32.totalorder %s79, 0
      %s82 = sadd.s32 %s81, 1
      %s83 = scalar_select %p80, %s81, %s82
      %p86 = pneg %p80
      %p87 = scmp.eq.s32.totalorder %s12, 1
      %p88 = por %p86, %p87
      %p89 = scmp.ne.s32.totalorder %s81, %s84
      %p90 = scmp.eq.s32.totalorder %s12, 0
      %p91 = por %p89, %p90
      %p92 = scmp.ne.s32.totalorder %s81, %s84
      %p93 = scmp.eq.s32.totalorder %s17, 1
      %p94 = por %p92, %p93
      %p95 = scmp.ne.s32.totalorder %s84, %s85
      %p96 = scmp.eq.s32.totalorder %s17, 0
      %p97 = por %p95, %p96
      %p98 = scmp.ne.s32.totalorder %s84, %s85
      %p99 = scmp.eq.s32.totalorder %s18, 1
      %p100 = por %p98, %p99
      %p102 = scmp.ne.s32.totalorder %s85, %s101
      %p103 = scmp.eq.s32.totalorder %s18, 0
      %p104 = por %p102, %p103
      %s105 = ssub.s32 %s19, %s31
      %p106 = scmp.eq.s32.totalorder %s105, 0
      %s108 = sadd.s32 %s107, 1
      %s109 = scalar_select %p106, %s107, %s108
      %p112 = pneg %p106
      %p113 = scmp.eq.s32.totalorder %s12, 1
      %p114 = por %p112, %p113
      %p115 = scmp.ne.s32.totalorder %s107, %s110
      %p116 = scmp.eq.s32.totalorder %s12, 0
      %p117 = por %p115, %p116
      %p118 = scmp.ne.s32.totalorder %s107, %s110
      %p119 = scmp.eq.s32.totalorder %s17, 1
      %p120 = por %p118, %p119
      %p121 = scmp.ne.s32.totalorder %s110, %s111
      %p122 = scmp.eq.s32.totalorder %s17, 0
      %p123 = por %p121, %p122
      %p124 = scmp.ne.s32.totalorder %s110, %s111
      %p125 = scmp.eq.s32.totalorder %s18, 1
      %p126 = por %p124, %p125
      %p128 = scmp.ne.s32.totalorder %s111, %s127
      %p129 = scmp.eq.s32.totalorder %s18, 0
      %p130 = por %p128, %p129
      %p131 = scmp.le.s32.totalorder 1, %s12
      %p132 = scmp.lt.s32.totalorder %s12, 3
      %p133 = pnand %p131, %p132
      %p134 = pneg %p133
      // Predicated region
      $region9: #{tpu_custom_call.1} parent=5 // pred_check
        _
      $region10: #{tpu_custom_call.1} parent=5 // pred_check_branch
        %136 = sbr.rel (%p133) target = $region12
      $region11: #{tpu_custom_call.1} parent=5 // pred_region
        %s137 = ssub.s32 %s12, 1
        // Predicated region
        $region13: #{tpu_custom_call.1} parent=11 // pred_check
          %p138 = pneg %p71
        $region14: #{tpu_custom_call.1} parent=11 // pred_check_branch
          %140 = sbr.rel (%p138) target = $region16
        $region15: #{tpu_custom_call.1} parent=11 // pred_region
          _
        $region16: #{tpu_custom_call.1} parent=11 // pred_fallthru
          _
        // Predicated region
        $region17: #{tpu_custom_call.1} parent=11 // pred_check
          %p141 = pneg %p97
        $region18: #{tpu_custom_call.1} parent=11 // pred_check_branch
          %143 = sbr.rel (%p141) target = $region20
        $region19: #{tpu_custom_call.1} parent=11 // pred_region
          %s144 = smul.u32 16, %s22
          %p145 = scmp.lt.s32.totalorder %s144, 15
          %s146 = scalar_select %p145, %s144, 15
          %s147 = smul.addr %s146, 4
          %s148 = scalar_lea.vmem %s2, %s147
          %s149 = smul.u32 16, %s22
        $region20: #{tpu_custom_call.1} parent=11 // pred_fallthru
          _
      $region12: #{tpu_custom_call.1} parent=5 // pred_fallthru
        _
      %p150 = scmp.lt.s32.totalorder %s12, 2
      // Predicated region
      $region21: #{tpu_custom_call.1} parent=5 // pred_check
        %p151 = pneg %p150
      $region22: #{tpu_custom_call.1} parent=5 // pred_check_branch
        %153 = sbr.rel (%p151) target = $region24
      $region23: #{tpu_custom_call.1} parent=5 // pred_region
        // Predicated region
        $region25: #{tpu_custom_call.1} parent=23 // pred_check
          %p154 = pneg %p44
        $region26: #{tpu_custom_call.1} parent=23 // pred_check_branch
          %156 = sbr.rel (%p154) target = $region28
        $region27: #{tpu_custom_call.1} parent=23 // pred_region
          %p157 = scmp.lt.s32.totalorder %s19, 1
          %s158 = scalar_select %p157, %s19, 1
          %s159 = smul.addr %s158, 8
          %s160 = scalar_lea.vmem %s0, %s159
        $region28: #{tpu_custom_call.1} parent=23 // pred_fallthru
          _
      $region24: #{tpu_custom_call.1} parent=5 // pred_fallthru
        _
      %p161 = scmp.le.s32.totalorder 1, %s12
      %p162 = scmp.lt.s32.totalorder %s12, 3
      %p163 = pnand %p161, %p162
      %p164 = pneg %p163
      // Predicated region
      $region29: #{tpu_custom_call.1} parent=5 // pred_check
        _
      $region30: #{tpu_custom_call.1} parent=5 // pred_check_branch
        %166 = sbr.rel (%p163) target = $region32
      $region31: #{tpu_custom_call.1} parent=5 // pred_region
        %s167 = ssub.s32 %s12, 1
        %p168 = scmp.lt.s32.totalorder %s21, 1
        %s169 = scalar_select %p168, %s21, 1
        %s170 = smul.addr %s169, 8
        %s171 = scalar_lea.vmem %s0, %s170
        %p172 = pneg %p50
        %p173 = pneg %p47
        %p174 = pneg %p71
        %p175 = pneg %p68
        %s176 = smul.u32 16, %s22
        %p177 = scmp.lt.s32.totalorder %s176, 15
        %s178 = scalar_select %p177, %s176, 15
        %s179 = smul.addr %s178, 4
        %s180 = scalar_lea.vmem %s2, %s179
        %p181 = pneg %p97
        %p182 = pneg %p94
        %p183 = pneg %p123
        %p184 = pneg %p120
        %s185 = sand.u32 %s110, 1
        %s186 = scalar_lea.sflag [#allocation7], %s185
        %s187 = sand.u32 %s110, 1
        %s188 = smul.addr %s187, 8
        %s189 = scalar_lea.vmem [#allocation6], %s188
        %p190 = scmp.lt.s32.totalorder %s21, 1
        %s191 = scalar_select %p190, %s21, 1
        %s192 = smul.addr %s191, 8
        %s193 = scalar_lea.vmem %s0, %s192
        %s194 = smul.u32 16, %s22
        %p195 = scmp.lt.s32.totalorder %s194, 15
        %s196 = scalar_select %p195, %s194, 15
        %s197 = smul.addr %s196, 4
        %s198 = scalar_lea.vmem %s2, %s197
        %s199 = smul.u32 16, %s22
        %p201 = scmp.eq.s32.totalorder %s22, 0
        // Predicated region
        $region33: #{tpu_custom_call.1} parent=31 // pred_check
          %p202 = pneg %p201
        $region34: #{tpu_custom_call.1} parent=31 // pred_check_branch
          %204 = sbr.rel (%p202) target = $region36
        $region35: #{tpu_custom_call.1} parent=31 // pred_region
          %v205 = vld [vmem:[%s193] sm:$0xff]
          %v206 = vld [vmem:[%s1] sm:$0x1]
          %v207 = vld [vmem:[%s1 + $0x1] sm:$0x1]
          %vm208 = vcmask 261120
          %v209 = vsel %vm208, %v205, 0.0
          %210 = vadd.xlane.f32.xlu0 %v209
          %v211 = vpop.xlane.xlu0 %210
          %v212 = vmul.f32 %v211, 0.03125
          %v213 = vsub.f32 %v205, %v212
          %v214 = vmul.f32 %v213, %v213
          %v215 = vsel %vm208, %v214, 0.0
          %216 = vadd.xlane.f32.xlu0 %v215
          %v217 = vpop.xlane.xlu0 %216
          %v218 = vmul.f32 %v217, 0.03125
          %v219 = vadd.f32 %v218, 1e-05
          %v220 = vrsqrt.pop %v219
          %v221 = vmul.f32 %v213, %v220
          %v222 = vlaneseq
          %v223 = vshrl.u32 %v222, 7
          %v224 = vsub.s32 0, %v223
          %v225 = vrot.slane %v206, %v224
          %v226 = vmul.f32 %v221, %v225
          %v227 = vlaneseq
          %v228 = vshrl.u32 %v227, 7
          %v229 = vsub.s32 0, %v228
          %v230 = vrot.slane %v207, %v229
          %v231 = vadd.f32 %v226, %v230
          %v232 = vmul.f32 %v231, 0.17677669
          %v233 = vpack.c.bf16 %v232, %v232
          %vm234 = vcmask 257024
          %235 = vst.msk [vmem:[#allocation2] sm:$0xf] %vm234, %v233
          %vm236 = vcmask 7168
          %237 = vst.msk [vmem:[#allocation3] sm:$0xff] %vm236, -inf
          %238 = vst.msk [vmem:[#allocation4] sm:$0xff] %vm236, 0.0
          %239 = vst.msk [vmem:[#allocation5] sm:$0xff] %vm208, 0.0
        $region36: #{tpu_custom_call.1} parent=31 // pred_fallthru
          _
        %v240 = vld [vmem:[%s198] sm:$0xf]
        %v241 = vld [vmem:[%s198 + $0x4] sm:$0xf]
        %v242 = vld [vmem:[%s198 + $0x8] sm:$0xf]
        %v243 = vld [vmem:[%s198 + $0xc] sm:$0xf]
        %v244 = vld [vmem:[%s198 + $0x10] sm:$0xf]
        %v245 = vld [vmem:[%s198 + $0x14] sm:$0xf]
        %v246 = vld [vmem:[%s198 + $0x18] sm:$0xf]
        %v247 = vld [vmem:[%s198 + $0x1c] sm:$0xf]
        %v248 = vld [vmem:[%s198 + $0x20] sm:$0xf]
        %v249 = vld [vmem:[%s198 + $0x24] sm:$0xf]
        %v250 = vld [vmem:[%s198 + $0x28] sm:$0xf]
        %v251 = vld [vmem:[%s198 + $0x2c] sm:$0xf]
        %v252 = vld [vmem:[%s198 + $0x30] sm:$0xf]
        %v253 = vld [vmem:[%s198 + $0x34] sm:$0xf]
        %v254 = vld [vmem:[%s198 + $0x38] sm:$0xf]
        %v255 = vld [vmem:[%s198 + $0x3c] sm:$0xf]
        %v256 = vld [vmem:[#allocation2] sm:$0xf]
        %v273 = vunpack.c.l.b16 %v240
        %v274 = vunpack.c.l.b16 %v241
        %v275 = vunpack.c.l.b16 %v242
        %v276 = vunpack.c.l.b16 %v243
        %v277 = vunpack.c.l.b16 %v244
        %v278 = vunpack.c.l.b16 %v245
        %v279 = vunpack.c.l.b16 %v246
        %v280 = vunpack.c.l.b16 %v247
        %v281 = vunpack.c.l.b16 %v248
        %v282 = vunpack.c.l.b16 %v249
        %v283 = vunpack.c.l.b16 %v250
        %v284 = vunpack.c.l.b16 %v251
        %v285 = vunpack.c.l.b16 %v252
        %v286 = vunpack.c.l.b16 %v253
        %v287 = vunpack.c.l.b16 %v254
        %v288 = vunpack.c.l.b16 %v255
        %v289 = vpack.c.b16 %v274, %v273
        %v290 = vpack.c.b16 %v276, %v275
        %v291 = vpack.c.b16 %v278, %v277
        %v292 = vpack.c.b16 %v280, %v279
        %v293 = vpack.c.b16 %v282, %v281
        %v294 = vpack.c.b16 %v284, %v283
        %v295 = vpack.c.b16 %v286, %v285
        %v296 = vpack.c.b16 %v288, %v287
        %vm297 = vcmask 261120
        %v299 = vsel %vm297, %v256, 0
        %v302 = vsel %vm297, %v289, 0
        %v305 = vsel %vm297, %v290, 0
        %v308 = vsel %vm297, %v291, 0
        %v311 = vsel %vm297, %v292, 0
        %v314 = vsel %vm297, %v293, 0
        %v317 = vsel %vm297, %v294, 0
        %v320 = vsel %vm297, %v295, 0
        %v323 = vsel %vm297, %v296, 0
        %325 = vmatprep.subr.bf16.mxu0 0
        %326 = vmatpush1.bf16.xpose.msra.mxu0 %v302
        %327 = vmatprep.subr.bf16.mxu0 0
        %328 = vmatpush1.bf16.xpose.msra.mxu0 %v305
        %329 = vmatprep.subr.bf16.mxu0 0
        %330 = vmatpush1.bf16.xpose.msra.mxu0 %v308
        %331 = vmatprep.subr.bf16.mxu0 0
        %332 = vmatpush1.bf16.xpose.msra.mxu0 %v311
        %333 = vmatprep.subr.bf16.mxu0 0
        %334 = vmatpush1.bf16.xpose.msra.mxu0 %v314
        %335 = vmatprep.subr.bf16.mxu0 0
        %336 = vmatpush1.bf16.xpose.msra.mxu0 %v317
        %337 = vmatprep.subr.bf16.mxu0 0
        %338 = vmatpush1.bf16.xpose.msra.mxu0 %v320
        %339 = vmatprep.subr.bf16.mxu0 0
        %340 = vmatpush1.bf16.xpose.msra.mxu0 %v323
        %341 = vmatprep.subr.bf16.mxu0 0
        %342 = vmatpush1.bf16.xpose.msra.mxu0 0
        %343 = vmatprep.subr.bf16.mxu0 0
        %344 = vmatpush1.bf16.xpose.msra.mxu0 0
        %345 = vmatprep.subr.bf16.mxu0 0
        %346 = vmatpush1.bf16.xpose.msra.mxu0 0
        %347 = vmatprep.subr.bf16.mxu0 0
        %348 = vmatpush1.bf16.xpose.msra.mxu0 0
        %349 = vmatprep.subr.bf16.mxu0 0
        %350 = vmatpush1.bf16.xpose.msra.mxu0 0
        %351 = vmatprep.subr.bf16.mxu0 0
        %352 = vmatpush1.bf16.xpose.msra.mxu0 0
        %353 = vmatprep.subr.bf16.mxu0 0
        %354 = vmatpush1.bf16.xpose.msra.mxu0 0
        %355 = vmatprep.subr.bf16.mxu0 0
        %356 = vmatpush1.bf16.xpose.msra.mxu0 0
        %357 = vmatprep.mubr.bf16.mxu0 0
        %358 = vmatmul.mubr.bf16.gmra.mrb[0].mxu0 %v299
        %v359 = vpop.f32.mrb[0].mxu0
        %v360 = vadd.f32 0.0, %v359
        %v361 = vpop.f32.mrb[0].mxu0
        %v362 = vpop.f32.mrb[0].mxu0
        %v363 = vpop.f32.mrb[0].mxu0
        %364 = vdwg.mxu0
        %s365 = smul.u32 %s22, 128
        %v366 = vlaneseq
        %v367 = vand.u32 %v366, 127
        %v368 = vstv %s365
        %v369 = vadd.s32 %v368, %v367
        %vm370 = vcmp.lt.s32.totalorder %v369, 16
        %s371 = smul.u32 %s21, 8
        %v372 = vlaneseq
        %v373 = vshrl.u32 %v372, 7
        %v374 = vstv %s371
        %v375 = vadd.s32 %v374, %v373
        %vm376 = vcmp.lt.s32.totalorder %v375, 0
        %v377 = vsub.s32 0, %v375
        %v378 = vsel %vm376, %v377, %v375
        %v379 = vshrl.u32 %v378, 3
        %v380 = vand.u32 %v378, 7
        %v381 = vsub.s32 0, %v380
        %v382 = vsel %vm376, %v381, %v380
        %vm383 = vcmp.le.s32.totalorder %v369, %v382
        %vm384 = vmand %vm370, %vm383
        %v385 = vsel %vm384, %v360, -1e+30
        %v386 = vld [vmem:[#allocation3] sm:$0xff]
        %387 = vmax.xlane.f32.xlu0 %v385
        %v388 = vpop.xlane.xlu0 %387
        %v389 = vmax.f32 %v386, %v388
        %v390 = vsub.f32 %v386, %v389
        %v391 = vmul.f32 %v390, 1.442695
        %v392 = vpow.pop %v391
        %394 = vset.pattern.permute.xlu0 0
        %395 = vperm.xlu0 %394, %v389
        %v396 = vpop.permute.xlu0 %395
        %v398 = vsub.f32 %v385, %v396
        %v399 = vmul.f32 %v398, 1.442695
        %v400 = vpow.pop %v399
        %v401 = vld [vmem:[#allocation4] sm:$0xff]
        %v402 = vmul.f32 %v392, %v401
        %403 = vadd.xlane.f32.xlu0 %v400
        %v404 = vpop.xlane.xlu0 %403
        %v405 = vadd.f32 %v402, %v404
        %vm406 = vcmask 7168
        %407 = vst.msk [vmem:[#allocation4] sm:$0xff] %vm406, %v405
        %v408 = vld [vmem:[#allocation5] sm:$0xff]
        %410 = vset.pattern.permute.xlu0 0
        %411 = vperm.xlu0 %410, %v392
        %v412 = vpop.permute.xlu0 %411
        %v414 = vmul.f32 %v412, %v408
        %v415 = vpack.c.bf16 %v400, %v400
        %424 = vmatprep.subr.bf16.mxu0 0
        %425 = vmatpush1.bf16.msra.mxu0 %v289
        %426 = vmatprep.subr.bf16.mxu0 0
        %427 = vmatpush1.bf16.msra.mxu0 %v290
        %428 = vmatprep.subr.bf16.mxu0 0
        %429 = vmatpush1.bf16.msra.mxu0 %v291
        %430 = vmatprep.subr.bf16.mxu0 0
        %431 = vmatpush1.bf16.msra.mxu0 %v292
        %432 = vmatprep.subr.bf16.mxu0 0
        %433 = vmatpush1.bf16.msra.mxu0 %v293
        %434 = vmatprep.subr.bf16.mxu0 0
        %435 = vmatpush1.bf16.msra.mxu0 %v294
        %436 = vmatprep.subr.bf16.mxu0 0
        %437 = vmatpush1.bf16.msra.mxu0 %v295
        %438 = vmatprep.subr.bf16.mxu0 0
        %439 = vmatpush1.bf16.msra.mxu0 %v296
        %440 = vmatprep.subr.bf16.mxu0 0
        %441 = vmatpush1.bf16.msra.mxu0 0
        %442 = vmatprep.subr.bf16.mxu0 0
        %443 = vmatpush1.bf16.msra.mxu0 0
        %444 = vmatprep.subr.bf16.mxu0 0
        %445 = vmatpush1.bf16.msra.mxu0 0
        %446 = vmatprep.subr.bf16.mxu0 0
        %447 = vmatpush1.bf16.msra.mxu0 0
        %448 = vmatprep.subr.bf16.mxu0 0
        %449 = vmatpush1.bf16.msra.mxu0 0
        %450 = vmatprep.subr.bf16.mxu0 0
        %451 = vmatpush1.bf16.msra.mxu0 0
        %452 = vmatprep.subr.bf16.mxu0 0
        %453 = vmatpush1.bf16.msra.mxu0 0
        %454 = vmatprep.subr.bf16.mxu0 0
        %455 = vmatpush1.bf16.msra.mxu0 0
        %456 = vmatprep.mubr.bf16.mxu0 0
        %457 = vmatmul.mubr.bf16.gmra.mrb[0].mxu0 %v415
        %v458 = vpop.f32.mrb[0].mxu0
        %v459 = vadd.f32 0.0, %v458
        %v460 = vpop.f32.mrb[0].mxu0
        %v461 = vpop.f32.mrb[0].mxu0
        %v462 = vpop.f32.mrb[0].mxu0
        %463 = vdwg.mxu0
        %v464 = vadd.f32 %v414, %v459
        %465 = vst.msk [vmem:[#allocation5] sm:$0xff] %vm297, %v464
        %466 = vst.msk [vmem:[#allocation3] sm:$0xff] %vm406, %v389
        // Predicated region
        $region37: #{tpu_custom_call.1} parent=31 // pred_check
          %p467 = pneg %p201
        $region38: #{tpu_custom_call.1} parent=31 // pred_check_branch
          %469 = sbr.rel (%p467) target = $region40
        $region39: #{tpu_custom_call.1} parent=31 // pred_region
          %v470 = vld [vmem:[#allocation4] sm:$0xff]
          %v471 = vrcp.pop %v470
          %v472 = vld [vmem:[#allocation5] sm:$0xff]
          %474 = vset.pattern.permute.xlu0 0
          %475 = vperm.xlu0 %474, %v471
          %v476 = vpop.permute.xlu0 %475
          %v478 = vmul.f32 %v472, %v476
          %479 = vst.msk [vmem:[%s189] sm:$0xff] %vm297, %v478
        $region40: #{tpu_custom_call.1} parent=31 // pred_fallthru
          _
        %s480 = sand.u32 %s110, 1
        %s481 = scalar_lea.sflag [#allocation7], %s480
        %s482 = sand.u32 %s110, 1
        %s483 = smul.addr %s482, 8
        %s484 = scalar_lea.vmem [#allocation6], %s483
        // Predicated region
        $region41: #{tpu_custom_call.1} parent=31 // pred_check
          %p485 = pneg %p120
        $region42: #{tpu_custom_call.1} parent=31 // pred_check_branch
          %487 = sbr.rel (%p485) target = $region44
        $region43: #{tpu_custom_call.1} parent=31 // pred_region
          %s489 = ssub.s32 128, 128
          %490 = vsyncadd %s481, %s489
          %s491 = smul.addr %s21, 128
          %s492 = scalar_lea.hbm %s3, %s491
          %s494 = sshll.u32 %s484, 4
          %s495 = int_to_ptr.vmem [resolvable:$true] %s494
          %497 = dma.vmem_to_hbm [thread:$0]  %s495, 128, %s492, %s481
        $region44: #{tpu_custom_call.1} parent=31 // pred_fallthru
          _
      $region32: #{tpu_custom_call.1} parent=5 // pred_fallthru
        _
      %p498 = scmp.le.s32.totalorder 2, %s12
      // Predicated region
      $region45: #{tpu_custom_call.1} parent=5 // pred_check
        %p499 = pneg %p498
      $region46: #{tpu_custom_call.1} parent=5 // pred_check_branch
        %501 = sbr.rel (%p499) target = $region48
      $region47: #{tpu_custom_call.1} parent=5 // pred_region
        %s502 = ssub.s32 %s12, 2
        // Predicated region
        $region49: #{tpu_custom_call.1} parent=47 // pred_check
          %p503 = pneg %p126
        $region50: #{tpu_custom_call.1} parent=47 // pred_check_branch
          %505 = sbr.rel (%p503) target = $region52
        $region51: #{tpu_custom_call.1} parent=47 // pred_region
          %s506 = sand.u32 %s111, 1
          %s507 = scalar_lea.sflag [#allocation7], %s506
          %s508 = sand.u32 %s111, 1
          %s509 = smul.addr %s508, 8
          %s510 = scalar_lea.vmem [#allocation6], %s509
          %511 = dma.done %s507, 128
        $region52: #{tpu_custom_call.1} parent=47 // pred_fallthru
          _
      $region48: #{tpu_custom_call.1} parent=5 // pred_fallthru
        _
    $region6: #{tpu_custom_call.1} parent=1 // loop_footer
      %s16 = sadd.s32 1, %s12
    $region7: #{tpu_custom_call.1} parent=1 // loop_footer_branch
      %11 = sbr.rel target = $region3
    $region8: #{tpu_custom_call.1} parent=1 // loop_exit
      _
    %512 = vsyncpa [#allocation7], 1
    %s513 = scalar_lea.sflag [#allocation7], 1
    %514 = vsyncpa %s513, 1

</llo_original>
